<compile_context>
chip_gen: v6e
topology: v6e:2x2x1
jax: 0.10.0
libtpu: 0.0.40
codegen_flags: <defaults>
</compile_context>

<pallas_src>
import numpy as np
import jax
import jax.numpy as jnp
from jax.experimental import pallas as pl
from jax.experimental.pallas import tpu as pltpu

EPS = 1e-8  # asteroid norms use eps = 1e-8


# ----------------------------------------------------------------------------
# In-kernel helpers
# ----------------------------------------------------------------------------
def _prelu(x, a):
    return jnp.where(x >= 0, x, a * x)


def _gln(x, g, be):
    """Global LayerNorm over the whole (T, C) slab (gLN).
    Two-pass centered variance (stable): d = x - mean; v = mean(d*d);
    out = d * (g * rsqrt(v+eps)) + be."""
    m = jnp.mean(x)
    d = x - m
    v = jnp.mean(d * d)
    gs = g * jax.lax.rsqrt(v + EPS)
    return d * gs + be


def _round_up(x, m):
    return (x + m - 1) // m * m


# ----------------------------------------------------------------------------
# Fused TCN kernel: bottleneck -> NB Conv1DBlocks -> mask head
# ----------------------------------------------------------------------------
def make_fused_tcn_kernel(n_blocks, K, pad_max, bn):
    def kernel(x_ref, bn_g_ref, bn_be_ref, bn_w_ref, bn_b_ref,
               a1_ref, a2_ref, mask_a_ref,
               w_in_ref, vecs_ref, wd_ref, w_out_ref, b_out_ref,
               mask_w_ref, mask_b_ref,
               score_ref,
               out_acc, skip_acc, h_pad):
        j = pl.program_id(1)
        n_total = pl.num_programs(1)
        T = out_acc.shape[0]
        hid = h_pad.shape[1]

        # -------- first block iteration: bottleneck gLN + 1x1 conv ----------
        @pl.when(j == 0)
        def _():
            x = x_ref[0]                                        # (T, in_chan) f32
            xn = _gln(x, bn_g_ref[...], bn_be_ref[...])
            out_acc[...] = (jnp.dot(xn.astype(jnp.bfloat16), bn_w_ref[...],
                                    preferred_element_type=jnp.float32)
                            + bn_b_ref[...])
            skip_acc[...] = jnp.zeros_like(skip_acc)
            h_pad[...] = jnp.zeros_like(h_pad)   # halo rows stay 0 for all blocks

        # -------- Conv1DBlock j ---------------------------------------------
        vecs = vecs_ref[0]                                      # (6, hid) f32
        b_in, g1, be1 = vecs[0:1, :], vecs[1:2, :], vecs[2:3, :]
        bd, g2, be2 = vecs[3:4, :], vecs[4:5, :], vecs[5:6, :]

        xb = out_acc[...]                                       # residual stream (T, bn)
        h = (jnp.dot(xb.astype(jnp.bfloat16), w_in_ref[0],
                     preferred_element_type=jnp.float32) + b_in)   # in_conv1d (1x1)
        h = _prelu(h, a1_ref[j])
        h = _gln(h, g1, be1)

        # Depthwise dilated conv ('same'): write h into the centre of the
        # zero-haloed padded scratch; the matching static-dilation branch
        # gathers K taps with static row offsets (no roll / iota / masks) and
        # writes the result back into the same centre rows.
        h_pad[pad_max:pad_max + T, :] = h
        wd = wd_ref[0]                                          # (K, hid) f32
        blk_in_rep = j % n_blocks
        for d_i in range(n_blocks):
            dil = 2 ** d_i
            @pl.when(blk_in_rep == d_i)
            def _(dil=dil):
                pad = (K - 1) * dil // 2
                base = pad_max - pad
                acc = jnp.zeros((T, hid), jnp.float32)
                for k in range(K):
                    off = base + k * dil
                    acc = acc + h_pad[off:off + T, :] * wd[k:k + 1, :]
                h_pad[pad_max:pad_max + T, :] = acc
        hd = h_pad[pad_max:pad_max + T, :] + bd

        # shared_nl_block: PReLU -> gLN
        s = _prelu(hd, a2_ref[j])
        s = _gln(s, g2, be2)

        # res_conv + skip_conv fused into one lane-wider (hid, bn+skip) matmul
        y = (jnp.dot(s.astype(jnp.bfloat16), w_out_ref[0],
                     preferred_element_type=jnp.float32) + b_out_ref[0])
        out_acc[...] = xb + y[:, :bn]                           # residual add
        skip_acc[...] = skip_acc[...] + y[:, bn:]               # skip accumulation

        # -------- last block iteration: mask head (score only) --------------
        @pl.when(j == n_total - 1)
        def _():
            hm = _prelu(skip_acc[...], mask_a_ref[0])
            score_ref[0] = (jnp.dot(hm.astype(jnp.bfloat16), mask_w_ref[...],
                                    preferred_element_type=jnp.float32)
                            + mask_b_ref[...])

    return kernel


# ----------------------------------------------------------------------------
# Wrapper: pack per-block weights and launch the single fused pallas_call
# ----------------------------------------------------------------------------
def tdconvnet_forward(mixture_w, params, *, n_src, out_chan, n_blocks,
                      n_repeats, K):
    """mixture_w: [batch, in_chan, n_frames] -> (score, est_mask), each
    [batch, n_src, out_chan, n_frames]."""
    B, in_chan, T = mixture_w.shape
    x_btc = jnp.transpose(mixture_w, (0, 2, 1)).astype(jnp.float32)   # (B, T, C)

    blocks = params["blocks"]
    NB = n_repeats * n_blocks
    assert len(blocks) == NB

    bn = blocks[0]["w_in"].shape[0]
    hid = blocks[0]["w_in"].shape[1]
    skip = blocks[0]["w_skip"].shape[1]
    c_mask = params["mask_w"].shape[1]
    c_pad = max(128, _round_up(c_mask, 128))                 # lane-dense output
    pad_max = (K - 1) * (2 ** (n_blocks - 1)) // 2

    to_bf16 = lambda a: a.astype(jnp.bfloat16)

    # MXU weights in bf16; small vectors stay f32 and are packed per block.
    w_in = to_bf16(jnp.stack([b["w_in"] for b in blocks], axis=0))          # (NB,bn,hid)
    w_out = to_bf16(jnp.stack(
        [jnp.concatenate([b["w_res"], b["w_skip"]], axis=1) for b in blocks], 0))  # (NB,hid,bn+skip)
    b_out = jnp.stack(
        [jnp.concatenate([b["b_res"], b["b_skip"]], axis=1) for b in blocks], 0)   # (NB,1,bn+skip)
    wd = jnp.stack([b["wd"] for b in blocks], 0)                            # (NB,K,hid) f32 (VPU)
    vecs = jnp.stack(
        [jnp.concatenate([b["b_in"], b["g1"], b["be1"],
                          b["bd"], b["g2"], b["be2"]], axis=0)
         for b in blocks], 0)                                               # (NB,6,hid)
    a1 = jnp.stack([b["a1"] for b in blocks]).astype(jnp.float32)           # (NB,)
    a2 = jnp.stack([b["a2"] for b in blocks]).astype(jnp.float32)           # (NB,)
    mask_a = jnp.reshape(params["mask_a"], (1,)).astype(jnp.float32)

    bn_w = to_bf16(params["bn_w"])
    mask_w = to_bf16(jnp.pad(params["mask_w"], ((0, 0), (0, c_pad - c_mask))))
    mask_b = jnp.pad(params["mask_b"], ((0, 0), (0, c_pad - c_mask))).astype(jnp.float32)

    # VMEM limit: ~80% of physical VMEM (≈51 MiB v7x, ≈102 MiB v5e/v6e).
    try:
        cap = int(getattr(pltpu.get_tpu_info(), "vmem_capacity_bytes",
                          64 * 1024 * 1024))
    except Exception:
        cap = 64 * 1024 * 1024
    vmem_limit = int(min(cap * 4 // 5, 112 * 1024 * 1024))

    flops = B * (2 * T * in_chan * bn
                 + NB * 2 * T * (bn * hid + hid * (bn + skip) + K * hid)
                 + 2 * T * skip * c_pad)
    bytes_accessed = (4 * x_btc.size + 4 * B * T * c_pad
                      + B * (2 * w_in.size + 2 * w_out.size + 4 * wd.size
                             + 4 * vecs.size + 4 * b_out.size)
                      + 2 * bn_w.size + 2 * mask_w.size)

    kernel = make_fused_tcn_kernel(n_blocks, K, pad_max, bn)

    score_btc = pl.pallas_call(
        kernel,
        out_shape=jax.ShapeDtypeStruct((B, T, c_pad), jnp.float32),
        grid=(B, NB),
        in_specs=[
            pl.BlockSpec((1, T, in_chan), lambda b, j: (b, 0, 0)),        # x
            pl.BlockSpec((1, in_chan), lambda b, j: (0, 0)),              # bn_g
            pl.BlockSpec((1, in_chan), lambda b, j: (0, 0)),              # bn_be
            pl.BlockSpec((in_chan, bn), lambda b, j: (0, 0)),             # bn_w (bf16)
            pl.BlockSpec((1, bn), lambda b, j: (0, 0)),                   # bn_b
            pl.BlockSpec(memory_space=pltpu.MemorySpace.SMEM),            # a1 (PReLU)
            pl.BlockSpec(memory_space=pltpu.MemorySpace.SMEM),            # a2 (PReLU)
            pl.BlockSpec(memory_space=pltpu.MemorySpace.SMEM),            # mask_a (PReLU)
            pl.BlockSpec((1, bn, hid), lambda b, j: (j, 0, 0)),           # w_in (bf16)
            pl.BlockSpec((1, 6, hid), lambda b, j: (j, 0, 0)),            # packed per-block vecs
            pl.BlockSpec((1, K, hid), lambda b, j: (j, 0, 0)),            # wd (depthwise)
            pl.BlockSpec((1, hid, bn + skip), lambda b, j: (j, 0, 0)),    # w_out (res|skip, bf16)
            pl.BlockSpec((1, 1, bn + skip), lambda b, j: (j, 0, 0)),      # b_out
            pl.BlockSpec((skip, c_pad), lambda b, j: (0, 0)),             # mask_w (bf16)
            pl.BlockSpec((1, c_pad), lambda b, j: (0, 0)),                # mask_b
        ],
        out_specs=pl.BlockSpec((1, T, c_pad), lambda b, j: (b, 0, 0)),
        scratch_shapes=[pltpu.VMEM((T, bn), jnp.float32),                 # residual stream
                        pltpu.VMEM((T, skip), jnp.float32),               # skip accumulator
                        pltpu.VMEM((T + 2 * pad_max, hid), jnp.float32)], # padded depthwise scratch
        compiler_params=pltpu.CompilerParams(
            dimension_semantics=("parallel", "arbitrary"),
            vmem_limit_bytes=vmem_limit),
        cost_estimate=pl.CostEstimate(flops=int(flops),
                                      transcendentals=int(B * (2 * NB + 1)),
                                      bytes_accessed=int(bytes_accessed)),
    )(x_btc, params["bn_g"], params["bn_be"], bn_w, params["bn_b"],
      a1, a2, mask_a, w_in, vecs, wd, w_out, b_out, mask_w, mask_b)

    score = jnp.transpose(score_btc[:, :, :c_mask], (0, 2, 1)).reshape(
        B, n_src, out_chan, T)
    est_mask = jnp.maximum(score, 0.0)                  # mask_act='relu' in consumer
    return score, est_mask


# ----------------------------------------------------------------------------
# Parameter construction (deterministic, synthetic; faithful shapes)
# ----------------------------------------------------------------------------
def init_params(key, in_chan, n_src, out_chan, n_blocks, n_repeats,
                bn_chan, hid_chan, skip_chan, K):
    def nrm(k, shape, scale=0.1):
        return scale * jax.random.normal(k, shape, dtype=jnp.float32)

    NB = n_blocks * n_repeats
    keys = iter(jax.random.split(key, 6 + 12 * NB))
    params = {
        "bn_g": 1.0 + nrm(next(keys), (1, in_chan)),
        "bn_be": nrm(next(keys), (1, in_chan)),
        "bn_w": nrm(next(keys), (in_chan, bn_chan)),
        "bn_b": nrm(next(keys), (1, bn_chan)),
        "mask_a": jnp.array(0.25, jnp.float32),
        "mask_w": nrm(next(keys), (skip_chan, n_src * out_chan)),
        "mask_b": nrm(next(keys), (1, n_src * out_chan)),
        "blocks": [],
    }
    for _ in range(NB):
        blk = {
            "w_in": nrm(next(keys), (bn_chan, hid_chan)),
            "b_in": nrm(next(keys), (1, hid_chan)),
            "a1": jnp.array(0.25, jnp.float32),
            "g1": 1.0 + nrm(next(keys), (1, hid_chan)),
            "be1": nrm(next(keys), (1, hid_chan)),
            "wd": nrm(next(keys), (K, hid_chan)),          # depthwise weights
            "bd": nrm(next(keys), (1, hid_chan)),
            "a2": jnp.array(0.25, jnp.float32),
            "g2": 1.0 + nrm(next(keys), (1, hid_chan)),
            "be2": nrm(next(keys), (1, hid_chan)),
            "w_res": nrm(next(keys), (hid_chan, bn_chan)),
            "b_res": nrm(next(keys), (1, bn_chan)),
            "w_skip": nrm(next(keys), (hid_chan, skip_chan)),
            "b_skip": nrm(next(keys), (1, skip_chan)),
        }
        params["blocks"].append(blk)
    return params


# ----------------------------------------------------------------------------
# Pure-JAX f32 reference (PyTorch-faithful formulation) for the parity check
# ----------------------------------------------------------------------------
def tdconvnet_reference(mixture_w, params, *, n_src, out_chan, n_blocks,
                        n_repeats, K):
    B, in_chan, T = mixture_w.shape
    x = jnp.transpose(mixture_w, (0, 2, 1)).astype(jnp.float32)

    def gln(h, g, be):   # two-pass (centered) variance, like asteroid GlobLN
        m = jnp.mean(h, axis=(1, 2), keepdims=True)
        v = jnp.mean((h - m) ** 2, axis=(1, 2), keepdims=True)
        return (h - m) / jnp.sqrt(v + EPS) * g + be

    def prelu(h, a):
        return jnp.where(h >= 0, h, a * h)

    out = gln(x, params["bn_g"], params["bn_be"])
    out = out @ params["bn_w"] + params["bn_b"]

    skip_sum = None
    idx = 0
    for _ in range(n_repeats):
        for xb in range(n_blocks):
            dil = 2 ** xb
            pad = (K - 1) * dil // 2
            p = params["blocks"][idx]
            h = out @ p["w_in"] + p["b_in"]
            h = prelu(h, p["a1"])
            h = gln(h, p["g1"], p["be1"])
            hp = jnp.pad(h, ((0, 0), (pad, pad), (0, 0)))
            acc = jnp.zeros_like(h)
            for k in range(K):
                acc = acc + hp[:, k * dil:k * dil + T, :] * p["wd"][k]
            acc = acc + p["bd"]
            s = prelu(acc, p["a2"])
            s = gln(s, p["g2"], p["be2"])
            res = s @ p["w_res"] + p["b_res"]
            skip = s @ p["w_skip"] + p["b_skip"]
            out = out + res
            skip_sum = skip if skip_sum is None else skip_sum + skip
            idx += 1

    hm = prelu(skip_sum, params["mask_a"])
    sc = hm @ params["mask_w"] + params["mask_b"]
    score = jnp.transpose(sc, (0, 2, 1)).reshape(B, n_src, out_chan, T)
    est_mask = jnp.maximum(score, 0.0)
    return score, est_mask


# ----------------------------------------------------------------------------
if __name__ == "__main__":
    # small config consistent with the module
    B, in_chan, T = 2, 16, 16
    n_src = 2
    out_chan = in_chan            # out_chan=None -> in_chan
    n_blocks, n_repeats = 2, 2
    bn_chan, hid_chan, skip_chan = 16, 32, 16
    K = 3

    key = jax.random.PRNGKey(0)
    k_x, k_p = jax.random.split(key)
    mixture_w = jax.random.normal(k_x, (B, in_chan, T), dtype=jnp.float32)
    params = init_params(k_p, in_chan, n_src, out_chan, n_blocks, n_repeats,
                         bn_chan, hid_chan, skip_chan, K)

    score, est_mask = tdconvnet_forward(
        mixture_w, params, n_src=n_src, out_chan=out_chan,
        n_blocks=n_blocks, n_repeats=n_repeats, K=K)
    jax.block_until_ready((score, est_mask))

    assert score.shape == (B, n_src, out_chan, T)
    assert est_mask.shape == (B, n_src, out_chan, T)
    assert bool(jnp.all(est_mask >= 0.0))

    # correctness vs. pure-f32 reference; tolerance covers bf16 MXU operands
    # accumulated over NB residual blocks (the kernel's gLN formulation now
    # matches the reference exactly).
    score_exp, mask_exp = tdconvnet_reference(
        mixture_w, params, n_src=n_src, out_chan=out_chan,
        n_blocks=n_blocks, n_repeats=n_repeats, K=K)
    np.testing.assert_allclose(np.asarray(score), np.asarray(score_exp),
                               rtol=5e-2, atol=5e-2)
    np.testing.assert_allclose(np.asarray(est_mask), np.asarray(mask_exp),
                               rtol=5e-2, atol=5e-2)

    print("KERNEL_OK")
</pallas_src>

<mosaic_0001>
module attributes {stable_mosaic.version = 11 : i64} {
  func.func @kernel(%arg0: i32, %arg1: i32, %arg2: memref<1x16x16xf32, #tpu.memory_space<vmem>>, %arg3: memref<1x16xf32, #tpu.memory_space<vmem>>, %arg4: memref<1x16xf32, #tpu.memory_space<vmem>>, %arg5: memref<16x16xbf16, #tpu.memory_space<vmem>>, %arg6: memref<1x16xf32, #tpu.memory_space<vmem>>, %arg7: memref<4xf32, #tpu.memory_space<smem>>, %arg8: memref<4xf32, #tpu.memory_space<smem>>, %arg9: memref<1xf32, #tpu.memory_space<smem>>, %arg10: memref<1x16x32xbf16, #tpu.memory_space<vmem>>, %arg11: memref<1x6x32xf32, #tpu.memory_space<vmem>>, %arg12: memref<1x3x32xf32, #tpu.memory_space<vmem>>, %arg13: memref<1x32x32xbf16, #tpu.memory_space<vmem>>, %arg14: memref<1x1x32xf32, #tpu.memory_space<vmem>>, %arg15: memref<16x128xbf16, #tpu.memory_space<vmem>>, %arg16: memref<1x128xf32, #tpu.memory_space<vmem>>, %arg17: memref<1x16x128xf32, #tpu.memory_space<vmem>>, %arg18: memref<16x16xf32, #tpu.memory_space<vmem>>, %arg19: memref<16x16xf32, #tpu.memory_space<vmem>>, %arg20: memref<20x32xf32, #tpu.memory_space<vmem>>) attributes {dimension_semantics = [#tpu.dimension_semantics<parallel>, #tpu.dimension_semantics<arbitrary>], iteration_bounds = array<i64: 2, 4>, scalar_prefetch = 0 : i64, scratch_operands = 3 : i64, tpu.core_type = #tpu.core_type<tc>, window_params = [{transform_indices = @transform_0, window_bounds = array<i64: 1, 16, 16>}, {pipeline_mode = #tpu.pipeline_mode<synchronous>, transform_indices = @transform_1, window_bounds = array<i64: 1, 16>}, {pipeline_mode = #tpu.pipeline_mode<synchronous>, transform_indices = @transform_2, window_bounds = array<i64: 1, 16>}, {pipeline_mode = #tpu.pipeline_mode<synchronous>, transform_indices = @transform_3, window_bounds = array<i64: 16, 16>}, {pipeline_mode = #tpu.pipeline_mode<synchronous>, transform_indices = @transform_4, window_bounds = array<i64: 1, 16>}, {transform_indices = @transform_5, window_bounds = array<i64: 4>}, {transform_indices = @transform_6, window_bounds = array<i64: 4>}, {transform_indices = @transform_7, window_bounds = array<i64: 1>}, {transform_indices = @transform_8, window_bounds = array<i64: 1, 16, 32>}, {transform_indices = @transform_9, window_bounds = array<i64: 1, 6, 32>}, {transform_indices = @transform_10, window_bounds = array<i64: 1, 3, 32>}, {transform_indices = @transform_11, window_bounds = array<i64: 1, 32, 32>}, {transform_indices = @transform_12, window_bounds = array<i64: 1, 1, 32>}, {pipeline_mode = #tpu.pipeline_mode<synchronous>, transform_indices = @transform_13, window_bounds = array<i64: 16, 128>}, {pipeline_mode = #tpu.pipeline_mode<synchronous>, transform_indices = @transform_14, window_bounds = array<i64: 1, 128>}, {transform_indices = @transform_15, window_bounds = array<i64: 1, 16, 128>}]} {
    %c0_i32 = arith.constant 0 : i32
    %0 = arith.cmpi eq, %arg1, %c0_i32 : i32
    %1 = arith.extui %0 : i1 to i32
    %c0_i32_0 = arith.constant 0 : i32
    %2 = arith.cmpi ne, %1, %c0_i32_0 : i32
    scf.if %2 {
      %c0_48 = arith.constant 0 : index
      %c0_49 = arith.constant 0 : index
      %c0_50 = arith.constant 0 : index
      %114 = vector.load %arg2[%c0_48, %c0_49, %c0_50] : memref<1x16x16xf32, #tpu.memory_space<vmem>>, vector<1x16x16xf32>
      %115 = vector.shape_cast %114 : vector<1x16x16xf32> to vector<16x16xf32>
      %c0_51 = arith.constant 0 : index
      %c0_52 = arith.constant 0 : index
      %116 = vector.load %arg3[%c0_51, %c0_52] : memref<1x16xf32, #tpu.memory_space<vmem>>, vector<1x16xf32>
      %c0_53 = arith.constant 0 : index
      %c0_54 = arith.constant 0 : index
      %117 = vector.load %arg4[%c0_53, %c0_54] : memref<1x16xf32, #tpu.memory_space<vmem>>, vector<1x16xf32>
      %118 = vector.shape_cast %115 : vector<16x16xf32> to vector<1x16x16xf32>
      %cst_55 = arith.constant dense<0.000000e+00> : vector<1xf32>
      %119 = vector.multi_reduction <add>, %118, %cst_55 [1, 2] : vector<1x16x16xf32> to vector<1xf32>
      %120 = vector.shape_cast %119 : vector<1xf32> to vector<1x1x1xf32>
      %121 = vector.extract %120[0, 0, 0] : f32 from vector<1x1x1xf32>
      %cst_56 = arith.constant 2.560000e+02 : f32
      %122 = arith.divf %121, %cst_56 : f32
      %123 = vector.broadcast %122 : f32 to vector<16x16xf32>
      %124 = arith.subf %115, %123 : vector<16x16xf32>
      %125 = arith.mulf %124, %124 : vector<16x16xf32>
      %126 = vector.shape_cast %125 : vector<16x16xf32> to vector<1x16x16xf32>
      %cst_57 = arith.constant dense<0.000000e+00> : vector<1xf32>
      %127 = vector.multi_reduction <add>, %126, %cst_57 [1, 2] : vector<1x16x16xf32> to vector<1xf32>
      %128 = vector.shape_cast %127 : vector<1xf32> to vector<1x1x1xf32>
      %129 = vector.extract %128[0, 0, 0] : f32 from vector<1x1x1xf32>
      %cst_58 = arith.constant 2.560000e+02 : f32
      %130 = arith.divf %129, %cst_58 : f32
      %cst_59 = arith.constant 9.99999993E-9 : f32
      %131 = arith.addf %130, %cst_59 : f32
      %132 = math.rsqrt %131 : f32
      %133 = vector.broadcast %132 : f32 to vector<1x16xf32>
      %134 = arith.mulf %116, %133 : vector<1x16xf32>
      %135 = vector.broadcast %134 : vector<1x16xf32> to vector<16x16xf32>
      %136 = arith.mulf %124, %135 : vector<16x16xf32>
      %137 = vector.broadcast %117 : vector<1x16xf32> to vector<16x16xf32>
      %138 = arith.addf %136, %137 : vector<16x16xf32>
      %139 = arith.truncf %138 : vector<16x16xf32> to vector<16x16xbf16>
      %c0_60 = arith.constant 0 : index
      %c0_61 = arith.constant 0 : index
      %140 = vector.load %arg5[%c0_60, %c0_61] : memref<16x16xbf16, #tpu.memory_space<vmem>>, vector<16x16xbf16>
      %cst_62 = arith.constant dense<0.000000e+00> : vector<16x16xf32>
      %141 = tpu.matmul %139, %140, %cst_62 {dimension_numbers = #tpu.dot_dimension_numbers<[1], [0], [0], [1], [0, 0, 1, 1], [], []>} : vector<16x16xbf16>, vector<16x16xbf16>, vector<16x16xf32> -> vector<16x16xf32>
      %c0_63 = arith.constant 0 : index
      %c0_64 = arith.constant 0 : index
      %142 = vector.load %arg6[%c0_63, %c0_64] : memref<1x16xf32, #tpu.memory_space<vmem>>, vector<1x16xf32>
      %143 = vector.broadcast %142 : vector<1x16xf32> to vector<16x16xf32>
      %144 = arith.addf %141, %143 : vector<16x16xf32>
      %c0_65 = arith.constant 0 : index
      %c0_66 = arith.constant 0 : index
      %145 = vector.load %arg18[%c0_65, %c0_66] : memref<16x16xf32, #tpu.memory_space<vmem>>, vector<16x16xf32>
      tpu.vector_store %arg18[%c0_65, %c0_66], %144 {strides = array<i32>} : memref<16x16xf32, #tpu.memory_space<vmem>>, vector<16x16xf32>,
      %cst_67 = arith.constant 0.000000e+00 : f32
      %146 = vector.broadcast %cst_67 : f32 to vector<16x16xf32>
      %c0_68 = arith.constant 0 : index
      %c0_69 = arith.constant 0 : index
      %147 = vector.load %arg19[%c0_68, %c0_69] : memref<16x16xf32, #tpu.memory_space<vmem>>, vector<16x16xf32>
      tpu.vector_store %arg19[%c0_68, %c0_69], %146 {strides = array<i32>} : memref<16x16xf32, #tpu.memory_space<vmem>>, vector<16x16xf32>,
      %cst_70 = arith.constant 0.000000e+00 : f32
      %148 = vector.broadcast %cst_70 : f32 to vector<20x32xf32>
      %c0_71 = arith.constant 0 : index
      %c0_72 = arith.constant 0 : index
      %149 = vector.load %arg20[%c0_71, %c0_72] : memref<20x32xf32, #tpu.memory_space<vmem>>, vector<20x32xf32>
      tpu.vector_store %arg20[%c0_71, %c0_72], %148 {strides = array<i32>} : memref<20x32xf32, #tpu.memory_space<vmem>>, vector<20x32xf32>,
    } else {
    }
    %c0 = arith.constant 0 : index
    %c0_1 = arith.constant 0 : index
    %c0_2 = arith.constant 0 : index
    %3 = vector.load %arg11[%c0, %c0_1, %c0_2] : memref<1x6x32xf32, #tpu.memory_space<vmem>>, vector<1x6x32xf32>
    %4 = vector.shape_cast %3 : vector<1x6x32xf32> to vector<6x32xf32>
    %5 = vector.extract_strided_slice %4 {offsets = [0, 0], sizes = [1, 32], strides = [1, 1]} : vector<6x32xf32> to vector<1x32xf32>
    %6 = vector.extract_strided_slice %4 {offsets = [1, 0], sizes = [1, 32], strides = [1, 1]} : vector<6x32xf32> to vector<1x32xf32>
    %7 = vector.extract_strided_slice %4 {offsets = [2, 0], sizes = [1, 32], strides = [1, 1]} : vector<6x32xf32> to vector<1x32xf32>
    %8 = vector.extract_strided_slice %4 {offsets = [3, 0], sizes = [1, 32], strides = [1, 1]} : vector<6x32xf32> to vector<1x32xf32>
    %9 = vector.extract_strided_slice %4 {offsets = [4, 0], sizes = [1, 32], strides = [1, 1]} : vector<6x32xf32> to vector<1x32xf32>
    %10 = vector.extract_strided_slice %4 {offsets = [5, 0], sizes = [1, 32], strides = [1, 1]} : vector<6x32xf32> to vector<1x32xf32>
    %c0_3 = arith.constant 0 : index
    %c0_4 = arith.constant 0 : index
    %11 = vector.load %arg18[%c0_3, %c0_4] : memref<16x16xf32, #tpu.memory_space<vmem>>, vector<16x16xf32>
    %12 = arith.truncf %11 : vector<16x16xf32> to vector<16x16xbf16>
    %c0_5 = arith.constant 0 : index
    %c0_6 = arith.constant 0 : index
    %c0_7 = arith.constant 0 : index
    %13 = vector.load %arg10[%c0_5, %c0_6, %c0_7] : memref<1x16x32xbf16, #tpu.memory_space<vmem>>, vector<1x16x32xbf16>
    %14 = vector.shape_cast %13 : vector<1x16x32xbf16> to vector<16x32xbf16>
    %cst = arith.constant dense<0.000000e+00> : vector<16x32xf32>
    %15 = tpu.matmul %12, %14, %cst {dimension_numbers = #tpu.dot_dimension_numbers<[1], [0], [0], [1], [0, 0, 1, 1], [], []>} : vector<16x16xbf16>, vector<16x32xbf16>, vector<16x32xf32> -> vector<16x32xf32>
    %16 = vector.broadcast %5 : vector<1x32xf32> to vector<16x32xf32>
    %17 = arith.addf %15, %16 : vector<16x32xf32>
    %18 = arith.index_cast %arg1 : i32 to index
    %19 = memref.load %arg7[%18] : memref<4xf32, #tpu.memory_space<smem>>
    %cst_8 = arith.constant 0.000000e+00 : f32
    %20 = vector.broadcast %cst_8 : f32 to vector<16x32xf32>
    %21 = arith.cmpf oge, %17, %20 : vector<16x32xf32>
    %22 = vector.broadcast %19 : f32 to vector<16x32xf32>
    %23 = arith.mulf %22, %17 : vector<16x32xf32>
    %24 = arith.select %21, %17, %23 : vector<16x32xi1>, vector<16x32xf32>
    %25 = vector.shape_cast %24 : vector<16x32xf32> to vector<1x16x32xf32>
    %cst_9 = arith.constant dense<0.000000e+00> : vector<1xf32>
    %26 = vector.multi_reduction <add>, %25, %cst_9 [1, 2] : vector<1x16x32xf32> to vector<1xf32>
    %27 = vector.shape_cast %26 : vector<1xf32> to vector<1x1x1xf32>
    %28 = vector.extract %27[0, 0, 0] : f32 from vector<1x1x1xf32>
    %cst_10 = arith.constant 5.120000e+02 : f32
    %29 = arith.divf %28, %cst_10 : f32
    %30 = vector.broadcast %29 : f32 to vector<16x32xf32>
    %31 = arith.subf %24, %30 : vector<16x32xf32>
    %32 = arith.mulf %31, %31 : vector<16x32xf32>
    %33 = vector.shape_cast %32 : vector<16x32xf32> to vector<1x16x32xf32>
    %cst_11 = arith.constant dense<0.000000e+00> : vector<1xf32>
    %34 = vector.multi_reduction <add>, %33, %cst_11 [1, 2] : vector<1x16x32xf32> to vector<1xf32>
    %35 = vector.shape_cast %34 : vector<1xf32> to vector<1x1x1xf32>
    %36 = vector.extract %35[0, 0, 0] : f32 from vector<1x1x1xf32>
    %cst_12 = arith.constant 5.120000e+02 : f32
    %37 = arith.divf %36, %cst_12 : f32
    %cst_13 = arith.constant 9.99999993E-9 : f32
    %38 = arith.addf %37, %cst_13 : f32
    %39 = math.rsqrt %38 : f32
    %40 = vector.broadcast %39 : f32 to vector<1x32xf32>
    %41 = arith.mulf %6, %40 : vector<1x32xf32>
    %42 = vector.broadcast %41 : vector<1x32xf32> to vector<16x32xf32>
    %43 = arith.mulf %31, %42 : vector<16x32xf32>
    %44 = vector.broadcast %7 : vector<1x32xf32> to vector<16x32xf32>
    %45 = arith.addf %43, %44 : vector<16x32xf32>
    %c2 = arith.constant 2 : index
    %c0_14 = arith.constant 0 : index
    %46 = vector.load %arg20[%c2, %c0_14] : memref<20x32xf32, #tpu.memory_space<vmem>>, vector<16x32xf32>
    tpu.vector_store %arg20[%c2, %c0_14], %45 {strides = array<i32>} : memref<20x32xf32, #tpu.memory_space<vmem>>, vector<16x32xf32>,
    %c0_15 = arith.constant 0 : index
    %c0_16 = arith.constant 0 : index
    %c0_17 = arith.constant 0 : index
    %47 = vector.load %arg12[%c0_15, %c0_16, %c0_17] : memref<1x3x32xf32, #tpu.memory_space<vmem>>, vector<1x3x32xf32>
    %48 = vector.shape_cast %47 : vector<1x3x32xf32> to vector<3x32xf32>
    %c2_i32 = arith.constant 2 : i32
    %c0_i32_18 = arith.constant 0 : i32
    %49 = arith.cmpi eq, %c2_i32, %c0_i32_18 : i32
    %c1_i32 = arith.constant 1 : i32
    %50 = arith.select %49, %c1_i32, %c2_i32 : i32
    %51 = arith.remsi %arg1, %50 : i32
    %c0_i32_19 = arith.constant 0 : i32
    %52 = arith.cmpi ne, %51, %c0_i32_19 : i32
    %c0_i32_20 = arith.constant 0 : i32
    %53 = arith.cmpi slt, %51, %c0_i32_20 : i32
    %c0_i32_21 = arith.constant 0 : i32
    %54 = arith.cmpi slt, %50, %c0_i32_21 : i32
    %55 = arith.xori %53, %54 : i1
    %56 = arith.andi %55, %52 : i1
    %57 = arith.addi %51, %50 : i32
    %58 = arith.select %56, %57, %51 : i32
    %c0_i32_22 = arith.constant 0 : i32
    %59 = arith.cmpi eq, %58, %c0_i32_22 : i32
    %60 = arith.extui %59 : i1 to i32
    %c0_i32_23 = arith.constant 0 : i32
    %61 = arith.cmpi ne, %60, %c0_i32_23 : i32
    scf.if %61 {
      %cst_48 = arith.constant 0.000000e+00 : f32
      %114 = vector.broadcast %cst_48 : f32 to vector<16x32xf32>
      %c1 = arith.constant 1 : index
      %c0_49 = arith.constant 0 : index
      %115 = vector.load %arg20[%c1, %c0_49] : memref<20x32xf32, #tpu.memory_space<vmem>>, vector<16x32xf32>
      %116 = vector.extract_strided_slice %48 {offsets = [0, 0], sizes = [1, 32], strides = [1, 1]} : vector<3x32xf32> to vector<1x32xf32>
      %117 = vector.broadcast %116 : vector<1x32xf32> to vector<16x32xf32>
      %118 = arith.mulf %115, %117 : vector<16x32xf32>
      %119 = arith.addf %114, %118 : vector<16x32xf32>
      %c2_50 = arith.constant 2 : index
      %c0_51 = arith.constant 0 : index
      %120 = vector.load %arg20[%c2_50, %c0_51] : memref<20x32xf32, #tpu.memory_space<vmem>>, vector<16x32xf32>
      %121 = vector.extract_strided_slice %48 {offsets = [1, 0], sizes = [1, 32], strides = [1, 1]} : vector<3x32xf32> to vector<1x32xf32>
      %122 = vector.broadcast %121 : vector<1x32xf32> to vector<16x32xf32>
      %123 = arith.mulf %120, %122 : vector<16x32xf32>
      %124 = arith.addf %119, %123 : vector<16x32xf32>
      %c3 = arith.constant 3 : index
      %c0_52 = arith.constant 0 : index
      %125 = vector.load %arg20[%c3, %c0_52] : memref<20x32xf32, #tpu.memory_space<vmem>>, vector<16x32xf32>
      %126 = vector.extract_strided_slice %48 {offsets = [2, 0], sizes = [1, 32], strides = [1, 1]} : vector<3x32xf32> to vector<1x32xf32>
      %127 = vector.broadcast %126 : vector<1x32xf32> to vector<16x32xf32>
      %128 = arith.mulf %125, %127 : vector<16x32xf32>
      %129 = arith.addf %124, %128 : vector<16x32xf32>
      %c2_53 = arith.constant 2 : index
      %c0_54 = arith.constant 0 : index
      %130 = vector.load %arg20[%c2_53, %c0_54] : memref<20x32xf32, #tpu.memory_space<vmem>>, vector<16x32xf32>
      tpu.vector_store %arg20[%c2_53, %c0_54], %129 {strides = array<i32>} : memref<20x32xf32, #tpu.memory_space<vmem>>, vector<16x32xf32>,
    } else {
    }
    %c1_i32_24 = arith.constant 1 : i32
    %62 = arith.cmpi eq, %58, %c1_i32_24 : i32
    %63 = arith.extui %62 : i1 to i32
    %c0_i32_25 = arith.constant 0 : i32
    %64 = arith.cmpi ne, %63, %c0_i32_25 : i32
    scf.if %64 {
      %cst_48 = arith.constant 0.000000e+00 : f32
      %114 = vector.broadcast %cst_48 : f32 to vector<16x32xf32>
      %c0_49 = arith.constant 0 : index
      %c0_50 = arith.constant 0 : index
      %115 = vector.load %arg20[%c0_49, %c0_50] : memref<20x32xf32, #tpu.memory_space<vmem>>, vector<16x32xf32>
      %116 = vector.extract_strided_slice %48 {offsets = [0, 0], sizes = [1, 32], strides = [1, 1]} : vector<3x32xf32> to vector<1x32xf32>
      %117 = vector.broadcast %116 : vector<1x32xf32> to vector<16x32xf32>
      %118 = arith.mulf %115, %117 : vector<16x32xf32>
      %119 = arith.addf %114, %118 : vector<16x32xf32>
      %c2_51 = arith.constant 2 : index
      %c0_52 = arith.constant 0 : index
      %120 = vector.load %arg20[%c2_51, %c0_52] : memref<20x32xf32, #tpu.memory_space<vmem>>, vector<16x32xf32>
      %121 = vector.extract_strided_slice %48 {offsets = [1, 0], sizes = [1, 32], strides = [1, 1]} : vector<3x32xf32> to vector<1x32xf32>
      %122 = vector.broadcast %121 : vector<1x32xf32> to vector<16x32xf32>
      %123 = arith.mulf %120, %122 : vector<16x32xf32>
      %124 = arith.addf %119, %123 : vector<16x32xf32>
      %c4 = arith.constant 4 : index
      %c0_53 = arith.constant 0 : index
      %125 = vector.load %arg20[%c4, %c0_53] : memref<20x32xf32, #tpu.memory_space<vmem>>, vector<16x32xf32>
      %126 = vector.extract_strided_slice %48 {offsets = [2, 0], sizes = [1, 32], strides = [1, 1]} : vector<3x32xf32> to vector<1x32xf32>
      %127 = vector.broadcast %126 : vector<1x32xf32> to vector<16x32xf32>
      %128 = arith.mulf %125, %127 : vector<16x32xf32>
      %129 = arith.addf %124, %128 : vector<16x32xf32>
      %c2_54 = arith.constant 2 : index
      %c0_55 = arith.constant 0 : index
      %130 = vector.load %arg20[%c2_54, %c0_55] : memref<20x32xf32, #tpu.memory_space<vmem>>, vector<16x32xf32>
      tpu.vector_store %arg20[%c2_54, %c0_55], %129 {strides = array<i32>} : memref<20x32xf32, #tpu.memory_space<vmem>>, vector<16x32xf32>,
    } else {
    }
    %c2_26 = arith.constant 2 : index
    %c0_27 = arith.constant 0 : index
    %65 = vector.load %arg20[%c2_26, %c0_27] : memref<20x32xf32, #tpu.memory_space<vmem>>, vector<16x32xf32>
    %66 = vector.broadcast %8 : vector<1x32xf32> to vector<16x32xf32>
    %67 = arith.addf %65, %66 : vector<16x32xf32>
    %68 = arith.index_cast %arg1 : i32 to index
    %69 = memref.load %arg8[%68] : memref<4xf32, #tpu.memory_space<smem>>
    %cst_28 = arith.constant 0.000000e+00 : f32
    %70 = vector.broadcast %cst_28 : f32 to vector<16x32xf32>
    %71 = arith.cmpf oge, %67, %70 : vector<16x32xf32>
    %72 = vector.broadcast %69 : f32 to vector<16x32xf32>
    %73 = arith.mulf %72, %67 : vector<16x32xf32>
    %74 = arith.select %71, %67, %73 : vector<16x32xi1>, vector<16x32xf32>
    %75 = vector.shape_cast %74 : vector<16x32xf32> to vector<1x16x32xf32>
    %cst_29 = arith.constant dense<0.000000e+00> : vector<1xf32>
    %76 = vector.multi_reduction <add>, %75, %cst_29 [1, 2] : vector<1x16x32xf32> to vector<1xf32>
    %77 = vector.shape_cast %76 : vector<1xf32> to vector<1x1x1xf32>
    %78 = vector.extract %77[0, 0, 0] : f32 from vector<1x1x1xf32>
    %cst_30 = arith.constant 5.120000e+02 : f32
    %79 = arith.divf %78, %cst_30 : f32
    %80 = vector.broadcast %79 : f32 to vector<16x32xf32>
    %81 = arith.subf %74, %80 : vector<16x32xf32>
    %82 = arith.mulf %81, %81 : vector<16x32xf32>
    %83 = vector.shape_cast %82 : vector<16x32xf32> to vector<1x16x32xf32>
    %cst_31 = arith.constant dense<0.000000e+00> : vector<1xf32>
    %84 = vector.multi_reduction <add>, %83, %cst_31 [1, 2] : vector<1x16x32xf32> to vector<1xf32>
    %85 = vector.shape_cast %84 : vector<1xf32> to vector<1x1x1xf32>
    %86 = vector.extract %85[0, 0, 0] : f32 from vector<1x1x1xf32>
    %cst_32 = arith.constant 5.120000e+02 : f32
    %87 = arith.divf %86, %cst_32 : f32
    %cst_33 = arith.constant 9.99999993E-9 : f32
    %88 = arith.addf %87, %cst_33 : f32
    %89 = math.rsqrt %88 : f32
    %90 = vector.broadcast %89 : f32 to vector<1x32xf32>
    %91 = arith.mulf %9, %90 : vector<1x32xf32>
    %92 = vector.broadcast %91 : vector<1x32xf32> to vector<16x32xf32>
    %93 = arith.mulf %81, %92 : vector<16x32xf32>
    %94 = vector.broadcast %10 : vector<1x32xf32> to vector<16x32xf32>
    %95 = arith.addf %93, %94 : vector<16x32xf32>
    %96 = arith.truncf %95 : vector<16x32xf32> to vector<16x32xbf16>
    %c0_34 = arith.constant 0 : index
    %c0_35 = arith.constant 0 : index
    %c0_36 = arith.constant 0 : index
    %97 = vector.load %arg13[%c0_34, %c0_35, %c0_36] : memref<1x32x32xbf16, #tpu.memory_space<vmem>>, vector<1x32x32xbf16>
    %98 = vector.shape_cast %97 : vector<1x32x32xbf16> to vector<32x32xbf16>
    %cst_37 = arith.constant dense<0.000000e+00> : vector<16x32xf32>
    %99 = tpu.matmul %96, %98, %cst_37 {dimension_numbers = #tpu.dot_dimension_numbers<[1], [0], [0], [1], [0, 0, 1, 1], [], []>} : vector<16x32xbf16>, vector<32x32xbf16>, vector<16x32xf32> -> vector<16x32xf32>
    %c0_38 = arith.constant 0 : index
    %c0_39 = arith.constant 0 : index
    %c0_40 = arith.constant 0 : index
    %100 = vector.load %arg14[%c0_38, %c0_39, %c0_40] : memref<1x1x32xf32, #tpu.memory_space<vmem>>, vector<1x1x32xf32>
    %101 = vector.shape_cast %100 : vector<1x1x32xf32> to vector<1x32xf32>
    %102 = vector.broadcast %101 : vector<1x32xf32> to vector<16x32xf32>
    %103 = arith.addf %99, %102 : vector<16x32xf32>
    %104 = vector.extract_strided_slice %103 {offsets = [0, 0], sizes = [16, 16], strides = [1, 1]} : vector<16x32xf32> to vector<16x16xf32>
    %105 = arith.addf %11, %104 : vector<16x16xf32>
    %c0_41 = arith.constant 0 : index
    %c0_42 = arith.constant 0 : index
    %106 = vector.load %arg18[%c0_41, %c0_42] : memref<16x16xf32, #tpu.memory_space<vmem>>, vector<16x16xf32>
    tpu.vector_store %arg18[%c0_41, %c0_42], %105 {strides = array<i32>} : memref<16x16xf32, #tpu.memory_space<vmem>>, vector<16x16xf32>,
    %c0_43 = arith.constant 0 : index
    %c0_44 = arith.constant 0 : index
    %107 = vector.load %arg19[%c0_43, %c0_44] : memref<16x16xf32, #tpu.memory_space<vmem>>, vector<16x16xf32>
    %108 = vector.extract_strided_slice %103 {offsets = [0, 16], sizes = [16, 16], strides = [1, 1]} : vector<16x32xf32> to vector<16x16xf32>
    %109 = arith.addf %107, %108 : vector<16x16xf32>
    %c0_45 = arith.constant 0 : index
    %c0_46 = arith.constant 0 : index
    %110 = vector.load %arg19[%c0_45, %c0_46] : memref<16x16xf32, #tpu.memory_space<vmem>>, vector<16x16xf32>
    tpu.vector_store %arg19[%c0_45, %c0_46], %109 {strides = array<i32>} : memref<16x16xf32, #tpu.memory_space<vmem>>, vector<16x16xf32>,
    %c3_i32 = arith.constant 3 : i32
    %111 = arith.cmpi eq, %arg1, %c3_i32 : i32
    %112 = arith.extui %111 : i1 to i32
    %c0_i32_47 = arith.constant 0 : i32
    %113 = arith.cmpi ne, %112, %c0_i32_47 : i32
    scf.if %113 {
      %c0_48 = arith.constant 0 : index
      %c0_49 = arith.constant 0 : index
      %114 = vector.load %arg19[%c0_48, %c0_49] : memref<16x16xf32, #tpu.memory_space<vmem>>, vector<16x16xf32>
      %c0_50 = arith.constant 0 : index
      %115 = memref.load %arg9[%c0_50] : memref<1xf32, #tpu.memory_space<smem>>
      %cst_51 = arith.constant 0.000000e+00 : f32
      %116 = vector.broadcast %cst_51 : f32 to vector<16x16xf32>
      %117 = arith.cmpf oge, %114, %116 : vector<16x16xf32>
      %118 = vector.broadcast %115 : f32 to vector<16x16xf32>
      %119 = arith.mulf %118, %114 : vector<16x16xf32>
      %120 = arith.select %117, %114, %119 : vector<16x16xi1>, vector<16x16xf32>
      %121 = arith.truncf %120 : vector<16x16xf32> to vector<16x16xbf16>
      %c0_52 = arith.constant 0 : index
      %c0_53 = arith.constant 0 : index
      %122 = vector.load %arg15[%c0_52, %c0_53] : memref<16x128xbf16, #tpu.memory_space<vmem>>, vector<16x128xbf16>
      %cst_54 = arith.constant dense<0.000000e+00> : vector<16x128xf32>
      %123 = tpu.matmul %121, %122, %cst_54 {dimension_numbers = #tpu.dot_dimension_numbers<[1], [0], [0], [1], [0, 0, 1, 1], [], []>} : vector<16x16xbf16>, vector<16x128xbf16>, vector<16x128xf32> -> vector<16x128xf32>
      %c0_55 = arith.constant 0 : index
      %c0_56 = arith.constant 0 : index
      %124 = vector.load %arg16[%c0_55, %c0_56] : memref<1x128xf32, #tpu.memory_space<vmem>>, vector<1x128xf32>
      %125 = vector.broadcast %124 : vector<1x128xf32> to vector<16x128xf32>
      %126 = arith.addf %123, %125 : vector<16x128xf32>
      %c0_57 = arith.constant 0 : index
      %c0_58 = arith.constant 0 : index
      %c0_59 = arith.constant 0 : index
      %127 = vector.load %arg17[%c0_57, %c0_58, %c0_59] : memref<1x16x128xf32, #tpu.memory_space<vmem>>, vector<1x16x128xf32>
      %128 = vector.shape_cast %127 : vector<1x16x128xf32> to vector<16x128xf32>
      %129 = vector.shape_cast %126 : vector<16x128xf32> to vector<1x16x128xf32>
      tpu.vector_store %arg17[%c0_57, %c0_58, %c0_59], %129 {strides = array<i32>} : memref<1x16x128xf32, #tpu.memory_space<vmem>>, vector<1x16x128xf32>,
    } else {
    }
    return
  }
  func.func @transform_0(%arg0: i32, %arg1: i32) -> (i32, i32, i32) {
    %c0_i32 = arith.constant 0 : i32
    %c0_i32_0 = arith.constant 0 : i32
    %c0_i32_1 = arith.constant 0 : i32
    return %arg0, %c0_i32, %c0_i32_0 : i32, i32, i32
  }
  func.func @transform_1(%arg0: i32, %arg1: i32) -> (i32, i32) {
    %c0_i32 = arith.constant 0 : i32
    %c0_i32_0 = arith.constant 0 : i32
    %c0_i32_1 = arith.constant 0 : i32
    return %c0_i32, %c0_i32_0 : i32, i32
  }
  func.func @transform_2(%arg0: i32, %arg1: i32) -> (i32, i32) {
    %c0_i32 = arith.constant 0 : i32
    %c0_i32_0 = arith.constant 0 : i32
    %c0_i32_1 = arith.constant 0 : i32
    return %c0_i32, %c0_i32_0 : i32, i32
  }
  func.func @transform_3(%arg0: i32, %arg1: i32) -> (i32, i32) {
    %c0_i32 = arith.constant 0 : i32
    %c0_i32_0 = arith.constant 0 : i32
    %c0_i32_1 = arith.constant 0 : i32
    return %c0_i32, %c0_i32_0 : i32, i32
  }
  func.func @transform_4(%arg0: i32, %arg1: i32) -> (i32, i32) {
    %c0_i32 = arith.constant 0 : i32
    %c0_i32_0 = arith.constant 0 : i32
    %c0_i32_1 = arith.constant 0 : i32
    return %c0_i32, %c0_i32_0 : i32, i32
  }
  func.func @transform_5(%arg0: i32, %arg1: i32) -> i32 {
    %c0_i32 = arith.constant 0 : i32
    %c0_i32_0 = arith.constant 0 : i32
    return %c0_i32 : i32
  }
  func.func @transform_6(%arg0: i32, %arg1: i32) -> i32 {
    %c0_i32 = arith.constant 0 : i32
    %c0_i32_0 = arith.constant 0 : i32
    return %c0_i32 : i32
  }
  func.func @transform_7(%arg0: i32, %arg1: i32) -> i32 {
    %c0_i32 = arith.constant 0 : i32
    %c0_i32_0 = arith.constant 0 : i32
    return %c0_i32 : i32
  }
  func.func @transform_8(%arg0: i32, %arg1: i32) -> (i32, i32, i32) {
    %c0_i32 = arith.constant 0 : i32
    %c0_i32_0 = arith.constant 0 : i32
    %c0_i32_1 = arith.constant 0 : i32
    return %arg1, %c0_i32, %c0_i32_0 : i32, i32, i32
  }
  func.func @transform_9(%arg0: i32, %arg1: i32) -> (i32, i32, i32) {
    %c0_i32 = arith.constant 0 : i32
    %c0_i32_0 = arith.constant 0 : i32
    %c0_i32_1 = arith.constant 0 : i32
    return %arg1, %c0_i32, %c0_i32_0 : i32, i32, i32
  }
  func.func @transform_10(%arg0: i32, %arg1: i32) -> (i32, i32, i32) {
    %c0_i32 = arith.constant 0 : i32
    %c0_i32_0 = arith.constant 0 : i32
    %c0_i32_1 = arith.constant 0 : i32
    return %arg1, %c0_i32, %c0_i32_0 : i32, i32, i32
  }
  func.func @transform_11(%arg0: i32, %arg1: i32) -> (i32, i32, i32) {
    %c0_i32 = arith.constant 0 : i32
    %c0_i32_0 = arith.constant 0 : i32
    %c0_i32_1 = arith.constant 0 : i32
    return %arg1, %c0_i32, %c0_i32_0 : i32, i32, i32
  }
  func.func @transform_12(%arg0: i32, %arg1: i32) -> (i32, i32, i32) {
    %c0_i32 = arith.constant 0 : i32
    %c0_i32_0 = arith.constant 0 : i32
    %c0_i32_1 = arith.constant 0 : i32
    return %arg1, %c0_i32, %c0_i32_0 : i32, i32, i32
  }
  func.func @transform_13(%arg0: i32, %arg1: i32) -> (i32, i32) {
    %c0_i32 = arith.constant 0 : i32
    %c0_i32_0 = arith.constant 0 : i32
    %c0_i32_1 = arith.constant 0 : i32
    return %c0_i32, %c0_i32_0 : i32, i32
  }
  func.func @transform_14(%arg0: i32, %arg1: i32) -> (i32, i32) {
    %c0_i32 = arith.constant 0 : i32
    %c0_i32_0 = arith.constant 0 : i32
    %c0_i32_1 = arith.constant 0 : i32
    return %c0_i32, %c0_i32_0 : i32, i32
  }
  func.func @transform_15(%arg0: i32, %arg1: i32) -> (i32, i32, i32) {
    %c0_i32 = arith.constant 0 : i32
    %c0_i32_0 = arith.constant 0 : i32
    %c0_i32_1 = arith.constant 0 : i32
    return %arg0, %c0_i32, %c0_i32_0 : i32, i32, i32
  }
}

</mosaic_0001>

<llo_original>
// kernel: tpu_custom_call.1
$region0: #{tpu_custom_call.1}
  #allocation0 [shape = 'u32[]', space=smem, size = 0x4, offset = 0x4, fixed_abs, tag = 'smem constant byte address 0x4 - core index']
  #allocation1 [shape = 'u32[144,128]{1,0:T(1,128)}', space=vmem, size = 0x12000, scoped, tag = 'internal scratch']
  #allocation2 [shape = 'f32[16,16]{1,0:T(8,128)}', space=vmem, size = 0x2000, scoped, tag = 'scratch operand']
  #allocation3 [shape = 'f32[16,16]{1,0:T(8,128)}', space=vmem, size = 0x2000, scoped, tag = 'scratch operand']
  #allocation4 [shape = 'f32[20,32]{1,0:T(8,128)}', space=vmem, size = 0x3000, scoped, tag = 'scratch operand']
  #allocation5 [shape = 'f32[1]{0:T(128)S(6)}', space=smem, size = 0x200, scoped, tag = 'scoped memory for tpu_custom_call.1']
  %s0 = inlined_call_operand.vmem [shape: f32[2,16,16], index: 0, kind: input, shape index: {}]
  %s1 = inlined_call_operand.hbm [shape: f32[1,16], index: 1, kind: input, shape index: {}]
  %s2 = inlined_call_operand.hbm [shape: f32[1,16], index: 2, kind: input, shape index: {}]
  %s3 = inlined_call_operand.vmem [shape: bf16[16,16], index: 3, kind: input, shape index: {}]
  %s4 = inlined_call_operand.hbm [shape: f32[1,16], index: 4, kind: input, shape index: {}]
  %s5 = inlined_call_operand.hbm [shape: f32[4], index: 5, kind: input, shape index: {}]
  %s6 = inlined_call_operand.hbm [shape: f32[4], index: 6, kind: input, shape index: {}]
  %s7 = inlined_call_operand.<no memory space> [shape: f32[1], index: 7, kind: input, shape index: {}]
  %s8 = inlined_call_operand.hbm [shape: bf16[4,16,32], index: 8, kind: input, shape index: {}]
  %s9 = inlined_call_operand.vmem [shape: f32[4,6,32], index: 9, kind: input, shape index: {}]
  %s10 = inlined_call_operand.vmem [shape: f32[4,3,32], index: 10, kind: input, shape index: {}]
  %s11 = inlined_call_operand.vmem [shape: bf16[4,32,32], index: 11, kind: input, shape index: {}]
  %s12 = inlined_call_operand.hbm [shape: f32[4,1,32], index: 12, kind: input, shape index: {}]
  %s13 = inlined_call_operand.hbm [shape: bf16[16,128], index: 13, kind: input, shape index: {}]
  %s14 = inlined_call_operand.vmem [shape: f32[1,128], index: 14, kind: input, shape index: {}]
  %s15 = inlined_call_operand.hbm [shape: f32[2,16,128], index: 15, kind: output, shape index: {}]
  %s16 = sld [smem:[#allocation0]]
  $region141: #{tpu_custom_call.1} parent=0
    _
  %s18 = ssub.s32 1, %s16
  %s19 = scalar_select 0, %s18, %s16
  %20 = sst [smem:[#allocation5]] %s7
  $region1: #{tpu_custom_call.1} parent=0
    #allocation6 [shape = 'u8[512]{0}', space=vmem, size = 0x400, scoped, tag = 'input window, operand 1, single buffered']
    #allocation7 [shape = 's32[2]{0}', space=sflag, size = 0x8, scoped, tag = 'scoped memory for tpu_custom_call.1']
    #allocation8 [shape = 's32[2]{0}', space=sflag, size = 0x8, scoped, tag = 'scoped memory for tpu_custom_call.1']
    #allocation9 [shape = 's32[2]{0}', space=sflag, size = 0x8, scoped, tag = 'scoped memory for tpu_custom_call.1']
    #allocation10 [shape = 'u8[512]{0}', space=vmem, size = 0x400, scoped, tag = 'input window, operand 2, single buffered']
    #allocation11 [shape = 's32[1]{0}', space=sflag, size = 0x4, scoped, tag = 'scoped memory for tpu_custom_call.1']
    #allocation12 [shape = 'u8[512]{0}', space=vmem, size = 0x400, scoped, tag = 'input window, operand 4, single buffered']
    #allocation13 [shape = 'u8[512]{0}', space=smem, size = 0x200, scoped, tag = 'input window, operand 5, single buffered']
    #allocation14 [shape = 'u8[512]{0}', space=smem, size = 0x200, scoped, tag = 'input window, operand 6, single buffered']
    #allocation15 [shape = 's32[1]{0}', space=sflag, size = 0x4, scoped, tag = 'scoped memory for tpu_custom_call.1']
    #allocation16 [shape = 'u8[8192]{0}', space=vmem, size = 0x2000, scoped, tag = 'input window, operand 8']
    #allocation17 [shape = 's32[2]{0}', space=sflag, size = 0x8, scoped, tag = 'scoped memory for tpu_custom_call.1']
    #allocation18 [shape = 'u8[1024]{0}', space=vmem, size = 0x400, scoped, tag = 'input window, operand 12']
    #allocation19 [shape = 'u8[4096]{0}', space=vmem, size = 0x1000, scoped, tag = 'input window, operand 13, single buffered']
    #allocation20 [shape = 's32[1]{0}', space=sflag, size = 0x4, scoped, tag = 'scoped memory for tpu_custom_call.1']
    #allocation21 [shape = 'u8[16384]{0}', space=vmem, size = 0x4000, scoped, tag = 'output window, operand 0']
    %21 = vsyncpa [#allocation7], 0
    %22 = vsyncpa [#allocation11], 0
    %23 = vsyncpa [#allocation9], 0
    %24 = vsyncpa [#allocation15], 0
    %25 = vsyncpa [#allocation17], 0
    %s26 = scalar_lea.sflag [#allocation17], 1
    %27 = vsyncpa %s26, 0
    %28 = vsyncpa [#allocation20], 0
    %29 = vsyncpa [#allocation8], 0
    %s30 = scalar_lea.sflag [#allocation8], 1
    %31 = vsyncpa %s30, 0
    loop: start=0, step=1, limit=10
    $region2: #{tpu_custom_call.1} parent=1 // loop_pre_header
      _
    $region3: #{tpu_custom_call.1} parent=1 // loop_header
      %s33 = sphi 0, %s37
      %p34 = scmp.ge.s32.totalorder %s33, 10
      %s40 = sphi 0, %s52
      %s41 = sphi 0, %s48
      %s42 = sphi 0, %s40
      %s43 = sphi 0, %s41
      %s44 = sphi 0, %s42
      %s45 = sphi 0, %s43
      %s55 = sphi 0, %s57
      %s58 = sphi 0, %s55
      %s59 = sphi 0, %s58
      %s75 = sphi 0, %s59
      %s79 = sphi 0, %s79
      %s81 = sphi 0, %s79
      %s82 = sphi 0, %s81
      %s96 = sphi 0, %s82
      %s100 = sphi 0, %s100
      %s102 = sphi 0, %s100
      %s103 = sphi 0, %s102
      %s117 = sphi 0, %s103
      %s121 = sphi 0, %s121
      %s123 = sphi 0, %s121
      %s124 = sphi 0, %s123
      %s138 = sphi 0, %s124
      %s142 = sphi 0, %s142
      %s144 = sphi 0, %s142
      %s145 = sphi 0, %s144
      %s159 = sphi 0, %s145
      %s163 = sphi 0, %s163
      %s165 = sphi 0, %s163
      %s166 = sphi 0, %s165
      %s180 = sphi 0, %s166
      %s184 = sphi 0, %s184
      %s186 = sphi 0, %s184
      %s187 = sphi 0, %s186
      %s201 = sphi 0, %s187
      %s205 = sphi 0, %s205
      %s207 = sphi 0, %s205
      %s208 = sphi 0, %s207
      %s222 = sphi 0, %s208
      %s228 = sphi 0, %s230
      %s231 = sphi 0, %s228
      %s232 = sphi 0, %s231
      %s248 = sphi 0, %s232
      %s254 = sphi 0, %s256
      %s257 = sphi 0, %s254
      %s258 = sphi 0, %s257
      %s274 = sphi 0, %s258
      %s280 = sphi 0, %s282
      %s283 = sphi 0, %s280
      %s284 = sphi 0, %s283
      %s300 = sphi 0, %s284
      %s306 = sphi 0, %s308
      %s309 = sphi 0, %s306
      %s310 = sphi 0, %s309
      %s326 = sphi 0, %s310
      %s332 = sphi 0, %s334
      %s335 = sphi 0, %s332
      %s336 = sphi 0, %s335
      %s352 = sphi 0, %s336
      %s356 = sphi 0, %s356
      %s358 = sphi 0, %s356
      %s359 = sphi 0, %s358
      %s373 = sphi 0, %s359
      %s377 = sphi 0, %s377
      %s379 = sphi 0, %s377
      %s380 = sphi 0, %s379
      %s394 = sphi 0, %s380
      %s400 = sphi 0, %s402
      %s403 = sphi 0, %s400
      %s404 = sphi 0, %s403
      %s420 = sphi 0, %s404
    $region4: #{tpu_custom_call.1} parent=1 // loop_header_branch
      %36 = sbr.rel (%p34) target = $region8
    $region5: #{tpu_custom_call.1} parent=1 // loop_body
      %s38 = ssub.s32 %s33, 1
      %s39 = ssub.s32 %s33, 2
      %s46 = sadd.s32 1, %s41
      %p47 = scmp.ge.s32.totalorder %s46, 4
      %s48 = scalar_select %p47, 0, %s46
      %s49 = sadd.s32 1, %s40
      %s50 = scalar_select %p47, %s49, %s40
      %p51 = scmp.ge.s32.totalorder %s50, 2
      %s52 = scalar_select %p51, 0, %s50
      %s53 = ssub.s32 %s40, %s52
      %p54 = scmp.eq.s32.totalorder %s53, 0
      %s56 = sadd.s32 %s55, 1
      %s57 = scalar_select %p54, %s55, %s56
      %p60 = pneg %p54
      %p61 = scmp.eq.s32.totalorder %s33, 7
      %p62 = por %p60, %p61
      %p63 = scmp.ne.s32.totalorder %s55, %s58
      %p64 = scmp.eq.s32.totalorder %s33, 0
      %p65 = por %p63, %p64
      %p66 = scmp.ne.s32.totalorder %s55, %s58
      %p67 = scmp.eq.s32.totalorder %s38, 7
      %p68 = por %p66, %p67
      %p69 = scmp.ne.s32.totalorder %s58, %s59
      %p70 = scmp.eq.s32.totalorder %s38, 0
      %p71 = por %p69, %p70
      %p72 = scmp.ne.s32.totalorder %s58, %s59
      %p73 = scmp.eq.s32.totalorder %s39, 7
      %p74 = por %p72, %p73
      %p76 = scmp.ne.s32.totalorder %s59, %s75
      %p77 = scmp.eq.s32.totalorder %s39, 0
      %p78 = por %p76, %p77
      %s80 = sadd.s32 %s79, 1
      %p83 = scmp.eq.s32.totalorder %s33, 7
      %p84 = scmp.ne.s32.totalorder %s79, %s81
      %p85 = scmp.eq.s32.totalorder %s33, 0
      %p86 = por %p84, %p85
      %p87 = scmp.ne.s32.totalorder %s79, %s81
      %p88 = scmp.eq.s32.totalorder %s38, 7
      %p89 = por %p87, %p88
      %p90 = scmp.ne.s32.totalorder %s81, %s82
      %p91 = scmp.eq.s32.totalorder %s38, 0
      %p92 = por %p90, %p91
      %p93 = scmp.ne.s32.totalorder %s81, %s82
      %p94 = scmp.eq.s32.totalorder %s39, 7
      %p95 = por %p93, %p94
      %p97 = scmp.ne.s32.totalorder %s82, %s96
      %p98 = scmp.eq.s32.totalorder %s39, 0
      %p99 = por %p97, %p98
      %s101 = sadd.s32 %s100, 1
      %p104 = scmp.eq.s32.totalorder %s33, 7
      %p105 = scmp.ne.s32.totalorder %s100, %s102
      %p106 = scmp.eq.s32.totalorder %s33, 0
      %p107 = por %p105, %p106
      %p108 = scmp.ne.s32.totalorder %s100, %s102
      %p109 = scmp.eq.s32.totalorder %s38, 7
      %p110 = por %p108, %p109
      %p111 = scmp.ne.s32.totalorder %s102, %s103
      %p112 = scmp.eq.s32.totalorder %s38, 0
      %p113 = por %p111, %p112
      %p114 = scmp.ne.s32.totalorder %s102, %s103
      %p115 = scmp.eq.s32.totalorder %s39, 7
      %p116 = por %p114, %p115
      %p118 = scmp.ne.s32.totalorder %s103, %s117
      %p119 = scmp.eq.s32.totalorder %s39, 0
      %p120 = por %p118, %p119
      %s122 = sadd.s32 %s121, 1
      %p125 = scmp.eq.s32.totalorder %s33, 7
      %p126 = scmp.ne.s32.totalorder %s121, %s123
      %p127 = scmp.eq.s32.totalorder %s33, 0
      %p128 = por %p126, %p127
      %p129 = scmp.ne.s32.totalorder %s121, %s123
      %p130 = scmp.eq.s32.totalorder %s38, 7
      %p131 = por %p129, %p130
      %p132 = scmp.ne.s32.totalorder %s123, %s124
      %p133 = scmp.eq.s32.totalorder %s38, 0
      %p134 = por %p132, %p133
      %p135 = scmp.ne.s32.totalorder %s123, %s124
      %p136 = scmp.eq.s32.totalorder %s39, 7
      %p137 = por %p135, %p136
      %p139 = scmp.ne.s32.totalorder %s124, %s138
      %p140 = scmp.eq.s32.totalorder %s39, 0
      %p141 = por %p139, %p140
      %s143 = sadd.s32 %s142, 1
      %p146 = scmp.eq.s32.totalorder %s33, 7
      %p147 = scmp.ne.s32.totalorder %s142, %s144
      %p148 = scmp.eq.s32.totalorder %s33, 0
      %p149 = por %p147, %p148
      %p150 = scmp.ne.s32.totalorder %s142, %s144
      %p151 = scmp.eq.s32.totalorder %s38, 7
      %p152 = por %p150, %p151
      %p153 = scmp.ne.s32.totalorder %s144, %s145
      %p154 = scmp.eq.s32.totalorder %s38, 0
      %p155 = por %p153, %p154
      %p156 = scmp.ne.s32.totalorder %s144, %s145
      %p157 = scmp.eq.s32.totalorder %s39, 7
      %p158 = por %p156, %p157
      %p160 = scmp.ne.s32.totalorder %s145, %s159
      %p161 = scmp.eq.s32.totalorder %s39, 0
      %p162 = por %p160, %p161
      %s164 = sadd.s32 %s163, 1
      %p167 = scmp.eq.s32.totalorder %s33, 7
      %p168 = scmp.ne.s32.totalorder %s163, %s165
      %p169 = scmp.eq.s32.totalorder %s33, 0
      %p170 = por %p168, %p169
      %p171 = scmp.ne.s32.totalorder %s163, %s165
      %p172 = scmp.eq.s32.totalorder %s38, 7
      %p173 = por %p171, %p172
      %p174 = scmp.ne.s32.totalorder %s165, %s166
      %p175 = scmp.eq.s32.totalorder %s38, 0
      %p176 = por %p174, %p175
      %p177 = scmp.ne.s32.totalorder %s165, %s166
      %p178 = scmp.eq.s32.totalorder %s39, 7
      %p179 = por %p177, %p178
      %p181 = scmp.ne.s32.totalorder %s166, %s180
      %p182 = scmp.eq.s32.totalorder %s39, 0
      %p183 = por %p181, %p182
      %s185 = sadd.s32 %s184, 1
      %p188 = scmp.eq.s32.totalorder %s33, 7
      %p189 = scmp.ne.s32.totalorder %s184, %s186
      %p190 = scmp.eq.s32.totalorder %s33, 0
      %p191 = por %p189, %p190
      %p192 = scmp.ne.s32.totalorder %s184, %s186
      %p193 = scmp.eq.s32.totalorder %s38, 7
      %p194 = por %p192, %p193
      %p195 = scmp.ne.s32.totalorder %s186, %s187
      %p196 = scmp.eq.s32.totalorder %s38, 0
      %p197 = por %p195, %p196
      %p198 = scmp.ne.s32.totalorder %s186, %s187
      %p199 = scmp.eq.s32.totalorder %s39, 7
      %p200 = por %p198, %p199
      %p202 = scmp.ne.s32.totalorder %s187, %s201
      %p203 = scmp.eq.s32.totalorder %s39, 0
      %p204 = por %p202, %p203
      %s206 = sadd.s32 %s205, 1
      %p209 = scmp.eq.s32.totalorder %s33, 7
      %p210 = scmp.ne.s32.totalorder %s205, %s207
      %p211 = scmp.eq.s32.totalorder %s33, 0
      %p212 = por %p210, %p211
      %p213 = scmp.ne.s32.totalorder %s205, %s207
      %p214 = scmp.eq.s32.totalorder %s38, 7
      %p215 = por %p213, %p214
      %p216 = scmp.ne.s32.totalorder %s207, %s208
      %p217 = scmp.eq.s32.totalorder %s38, 0
      %p218 = por %p216, %p217
      %p219 = scmp.ne.s32.totalorder %s207, %s208
      %p220 = scmp.eq.s32.totalorder %s39, 7
      %p221 = por %p219, %p220
      %p223 = scmp.ne.s32.totalorder %s208, %s222
      %p224 = scmp.eq.s32.totalorder %s39, 0
      %p225 = por %p223, %p224
      %s226 = ssub.s32 %s41, %s48
      %p227 = scmp.eq.s32.totalorder %s226, 0
      %s229 = sadd.s32 %s228, 1
      %s230 = scalar_select %p227, %s228, %s229
      %p233 = pneg %p227
      %p234 = scmp.eq.s32.totalorder %s33, 7
      %p235 = por %p233, %p234
      %p236 = scmp.ne.s32.totalorder %s228, %s231
      %p237 = scmp.eq.s32.totalorder %s33, 0
      %p238 = por %p236, %p237
      %p239 = scmp.ne.s32.totalorder %s228, %s231
      %p240 = scmp.eq.s32.totalorder %s38, 7
      %p241 = por %p239, %p240
      %p242 = scmp.ne.s32.totalorder %s231, %s232
      %p243 = scmp.eq.s32.totalorder %s38, 0
      %p244 = por %p242, %p243
      %p245 = scmp.ne.s32.totalorder %s231, %s232
      %p246 = scmp.eq.s32.totalorder %s39, 7
      %p247 = por %p245, %p246
      %p249 = scmp.ne.s32.totalorder %s232, %s248
      %p250 = scmp.eq.s32.totalorder %s39, 0
      %p251 = por %p249, %p250
      %s252 = ssub.s32 %s41, %s48
      %p253 = scmp.eq.s32.totalorder %s252, 0
      %s255 = sadd.s32 %s254, 1
      %s256 = scalar_select %p253, %s254, %s255
      %p259 = pneg %p253
      %p260 = scmp.eq.s32.totalorder %s33, 7
      %p261 = por %p259, %p260
      %p262 = scmp.ne.s32.totalorder %s254, %s257
      %p263 = scmp.eq.s32.totalorder %s33, 0
      %p264 = por %p262, %p263
      %p265 = scmp.ne.s32.totalorder %s254, %s257
      %p266 = scmp.eq.s32.totalorder %s38, 7
      %p267 = por %p265, %p266
      %p268 = scmp.ne.s32.totalorder %s257, %s258
      %p269 = scmp.eq.s32.totalorder %s38, 0
      %p270 = por %p268, %p269
      %p271 = scmp.ne.s32.totalorder %s257, %s258
      %p272 = scmp.eq.s32.totalorder %s39, 7
      %p273 = por %p271, %p272
      %p275 = scmp.ne.s32.totalorder %s258, %s274
      %p276 = scmp.eq.s32.totalorder %s39, 0
      %p277 = por %p275, %p276
      %s278 = ssub.s32 %s41, %s48
      %p279 = scmp.eq.s32.totalorder %s278, 0
      %s281 = sadd.s32 %s280, 1
      %s282 = scalar_select %p279, %s280, %s281
      %p285 = pneg %p279
      %p286 = scmp.eq.s32.totalorder %s33, 7
      %p287 = por %p285, %p286
      %p288 = scmp.ne.s32.totalorder %s280, %s283
      %p289 = scmp.eq.s32.totalorder %s33, 0
      %p290 = por %p288, %p289
      %p291 = scmp.ne.s32.totalorder %s280, %s283
      %p292 = scmp.eq.s32.totalorder %s38, 7
      %p293 = por %p291, %p292
      %p294 = scmp.ne.s32.totalorder %s283, %s284
      %p295 = scmp.eq.s32.totalorder %s38, 0
      %p296 = por %p294, %p295
      %p297 = scmp.ne.s32.totalorder %s283, %s284
      %p298 = scmp.eq.s32.totalorder %s39, 7
      %p299 = por %p297, %p298
      %p301 = scmp.ne.s32.totalorder %s284, %s300
      %p302 = scmp.eq.s32.totalorder %s39, 0
      %p303 = por %p301, %p302
      %s304 = ssub.s32 %s41, %s48
      %p305 = scmp.eq.s32.totalorder %s304, 0
      %s307 = sadd.s32 %s306, 1
      %s308 = scalar_select %p305, %s306, %s307
      %p311 = pneg %p305
      %p312 = scmp.eq.s32.totalorder %s33, 7
      %p313 = por %p311, %p312
      %p314 = scmp.ne.s32.totalorder %s306, %s309
      %p315 = scmp.eq.s32.totalorder %s33, 0
      %p316 = por %p314, %p315
      %p317 = scmp.ne.s32.totalorder %s306, %s309
      %p318 = scmp.eq.s32.totalorder %s38, 7
      %p319 = por %p317, %p318
      %p320 = scmp.ne.s32.totalorder %s309, %s310
      %p321 = scmp.eq.s32.totalorder %s38, 0
      %p322 = por %p320, %p321
      %p323 = scmp.ne.s32.totalorder %s309, %s310
      %p324 = scmp.eq.s32.totalorder %s39, 7
      %p325 = por %p323, %p324
      %p327 = scmp.ne.s32.totalorder %s310, %s326
      %p328 = scmp.eq.s32.totalorder %s39, 0
      %p329 = por %p327, %p328
      %s330 = ssub.s32 %s41, %s48
      %p331 = scmp.eq.s32.totalorder %s330, 0
      %s333 = sadd.s32 %s332, 1
      %s334 = scalar_select %p331, %s332, %s333
      %p337 = pneg %p331
      %p338 = scmp.eq.s32.totalorder %s33, 7
      %p339 = por %p337, %p338
      %p340 = scmp.ne.s32.totalorder %s332, %s335
      %p341 = scmp.eq.s32.totalorder %s33, 0
      %p342 = por %p340, %p341
      %p343 = scmp.ne.s32.totalorder %s332, %s335
      %p344 = scmp.eq.s32.totalorder %s38, 7
      %p345 = por %p343, %p344
      %p346 = scmp.ne.s32.totalorder %s335, %s336
      %p347 = scmp.eq.s32.totalorder %s38, 0
      %p348 = por %p346, %p347
      %p349 = scmp.ne.s32.totalorder %s335, %s336
      %p350 = scmp.eq.s32.totalorder %s39, 7
      %p351 = por %p349, %p350
      %p353 = scmp.ne.s32.totalorder %s336, %s352
      %p354 = scmp.eq.s32.totalorder %s39, 0
      %p355 = por %p353, %p354
      %s357 = sadd.s32 %s356, 1
      %p360 = scmp.eq.s32.totalorder %s33, 7
      %p361 = scmp.ne.s32.totalorder %s356, %s358
      %p362 = scmp.eq.s32.totalorder %s33, 0
      %p363 = por %p361, %p362
      %p364 = scmp.ne.s32.totalorder %s356, %s358
      %p365 = scmp.eq.s32.totalorder %s38, 7
      %p366 = por %p364, %p365
      %p367 = scmp.ne.s32.totalorder %s358, %s359
      %p368 = scmp.eq.s32.totalorder %s38, 0
      %p369 = por %p367, %p368
      %p370 = scmp.ne.s32.totalorder %s358, %s359
      %p371 = scmp.eq.s32.totalorder %s39, 7
      %p372 = por %p370, %p371
      %p374 = scmp.ne.s32.totalorder %s359, %s373
      %p375 = scmp.eq.s32.totalorder %s39, 0
      %p376 = por %p374, %p375
      %s378 = sadd.s32 %s377, 1
      %p381 = scmp.eq.s32.totalorder %s33, 7
      %p382 = scmp.ne.s32.totalorder %s377, %s379
      %p383 = scmp.eq.s32.totalorder %s33, 0
      %p384 = por %p382, %p383
      %p385 = scmp.ne.s32.totalorder %s377, %s379
      %p386 = scmp.eq.s32.totalorder %s38, 7
      %p387 = por %p385, %p386
      %p388 = scmp.ne.s32.totalorder %s379, %s380
      %p389 = scmp.eq.s32.totalorder %s38, 0
      %p390 = por %p388, %p389
      %p391 = scmp.ne.s32.totalorder %s379, %s380
      %p392 = scmp.eq.s32.totalorder %s39, 7
      %p393 = por %p391, %p392
      %p395 = scmp.ne.s32.totalorder %s380, %s394
      %p396 = scmp.eq.s32.totalorder %s39, 0
      %p397 = por %p395, %p396
      %s398 = ssub.s32 %s40, %s52
      %p399 = scmp.eq.s32.totalorder %s398, 0
      %s401 = sadd.s32 %s400, 1
      %s402 = scalar_select %p399, %s400, %s401
      %p405 = pneg %p399
      %p406 = scmp.eq.s32.totalorder %s33, 7
      %p407 = por %p405, %p406
      %p408 = scmp.ne.s32.totalorder %s400, %s403
      %p409 = scmp.eq.s32.totalorder %s33, 0
      %p410 = por %p408, %p409
      %p411 = scmp.ne.s32.totalorder %s400, %s403
      %p412 = scmp.eq.s32.totalorder %s38, 7
      %p413 = por %p411, %p412
      %p414 = scmp.ne.s32.totalorder %s403, %s404
      %p415 = scmp.eq.s32.totalorder %s38, 0
      %p416 = por %p414, %p415
      %p417 = scmp.ne.s32.totalorder %s403, %s404
      %p418 = scmp.eq.s32.totalorder %s39, 7
      %p419 = por %p417, %p418
      %p421 = scmp.ne.s32.totalorder %s404, %s420
      %p422 = scmp.eq.s32.totalorder %s39, 0
      %p423 = por %p421, %p422
      %p424 = scmp.le.s32.totalorder 1, %s33
      %p425 = scmp.lt.s32.totalorder %s33, 9
      %p426 = pnand %p424, %p425
      %p427 = pneg %p426
      // Predicated region
      $region9: #{tpu_custom_call.1} parent=5 // pred_check
        _
      $region10: #{tpu_custom_call.1} parent=5 // pred_check_branch
        %429 = sbr.rel (%p426) target = $region12
      $region11: #{tpu_custom_call.1} parent=5 // pred_region
        %s430 = ssub.s32 %s33, 1
        // Predicated region
        $region13: #{tpu_custom_call.1} parent=11 // pred_check
          %p431 = pneg %p92
        $region14: #{tpu_custom_call.1} parent=11 // pred_check_branch
          %433 = sbr.rel (%p431) target = $region16
        $region15: #{tpu_custom_call.1} parent=11 // pred_region
          %s435 = ssub.s32 16, 16
          %436 = vsyncadd [#allocation7], %s435
          %s438 = sshll.u32 [#allocation6], 4
          %s439 = int_to_ptr.vmem [resolvable:$true] %s438
          %441 = dma.hbm_to_vmem [thread:$0]  %s1, 16, %s439, [#allocation7]
        $region16: #{tpu_custom_call.1} parent=11 // pred_fallthru
          _
        // Predicated region
        $region17: #{tpu_custom_call.1} parent=11 // pred_check
          %p442 = pneg %p113
        $region18: #{tpu_custom_call.1} parent=11 // pred_check_branch
          %444 = sbr.rel (%p442) target = $region20
        $region19: #{tpu_custom_call.1} parent=11 // pred_region
          %s446 = ssub.s32 16, 16
          %447 = vsyncadd [#allocation11], %s446
          %s449 = sshll.u32 [#allocation10], 4
          %s450 = int_to_ptr.vmem [resolvable:$true] %s449
          %452 = dma.hbm_to_vmem [thread:$0]  %s2, 16, %s450, [#allocation11]
        $region20: #{tpu_custom_call.1} parent=11 // pred_fallthru
          _
        // Predicated region
        $region21: #{tpu_custom_call.1} parent=11 // pred_check
          %p453 = pneg %p134
        $region22: #{tpu_custom_call.1} parent=11 // pred_check_branch
          %455 = sbr.rel (%p453) target = $region24
        $region23: #{tpu_custom_call.1} parent=11 // pred_region
          _
        $region24: #{tpu_custom_call.1} parent=11 // pred_fallthru
          _
        // Predicated region
        $region25: #{tpu_custom_call.1} parent=11 // pred_check
          %p456 = pneg %p155
        $region26: #{tpu_custom_call.1} parent=11 // pred_check_branch
          %458 = sbr.rel (%p456) target = $region28
        $region27: #{tpu_custom_call.1} parent=11 // pred_region
          %s460 = ssub.s32 16, 16
          %461 = vsyncadd [#allocation11], %s460
          %s463 = sshll.u32 [#allocation12], 4
          %s464 = int_to_ptr.vmem [resolvable:$true] %s463
          %466 = dma.hbm_to_vmem [thread:$0]  %s4, 16, %s464, [#allocation11]
        $region28: #{tpu_custom_call.1} parent=11 // pred_fallthru
          _
        // Predicated region
        $region29: #{tpu_custom_call.1} parent=11 // pred_check
          %p467 = pneg %p176
        $region30: #{tpu_custom_call.1} parent=11 // pred_check_branch
          %469 = sbr.rel (%p467) target = $region32
        $region31: #{tpu_custom_call.1} parent=11 // pred_region
          %s471 = ssub.s32 16, 16
          %472 = vsyncadd [#allocation9], %s471
          %475 = dma.hbm_to_smem %s5, 16, [#allocation13], [#allocation9]
        $region32: #{tpu_custom_call.1} parent=11 // pred_fallthru
          _
        // Predicated region
        $region33: #{tpu_custom_call.1} parent=11 // pred_check
          %p476 = pneg %p197
        $region34: #{tpu_custom_call.1} parent=11 // pred_check_branch
          %478 = sbr.rel (%p476) target = $region36
        $region35: #{tpu_custom_call.1} parent=11 // pred_region
          %s480 = ssub.s32 16, 16
          %481 = vsyncadd [#allocation15], %s480
          %484 = dma.hbm_to_smem %s6, 16, [#allocation14], [#allocation15]
        $region36: #{tpu_custom_call.1} parent=11 // pred_fallthru
          _
        // Predicated region
        $region37: #{tpu_custom_call.1} parent=11 // pred_check
          %p485 = pneg %p218
        $region38: #{tpu_custom_call.1} parent=11 // pred_check_branch
          %487 = sbr.rel (%p485) target = $region40
        $region39: #{tpu_custom_call.1} parent=11 // pred_region
          _
        $region40: #{tpu_custom_call.1} parent=11 // pred_fallthru
          _
        // Predicated region
        $region41: #{tpu_custom_call.1} parent=11 // pred_check
          %p488 = pneg %p369
        $region42: #{tpu_custom_call.1} parent=11 // pred_check_branch
          %490 = sbr.rel (%p488) target = $region44
        $region43: #{tpu_custom_call.1} parent=11 // pred_region
          %s492 = ssub.s32 128, 128
          %493 = vsyncadd [#allocation20], %s492
          %s494 = sshll.u32 [#allocation19], 4
          %s495 = int_to_ptr.vmem [resolvable:$true] %s494
          %500 = dma.hbm_to_vmem [thread:$0]  %s13, 128, %s495, [#allocation20], 64, 64, 4
        $region44: #{tpu_custom_call.1} parent=11 // pred_fallthru
          _
        // Predicated region
        $region45: #{tpu_custom_call.1} parent=11 // pred_check
          %p501 = pneg %p390
        $region46: #{tpu_custom_call.1} parent=11 // pred_check_branch
          %503 = sbr.rel (%p501) target = $region48
        $region47: #{tpu_custom_call.1} parent=11 // pred_region
          _
        $region48: #{tpu_custom_call.1} parent=11 // pred_fallthru
          _
      $region12: #{tpu_custom_call.1} parent=5 // pred_fallthru
        _
      %p504 = scmp.lt.s32.totalorder %s33, 8
      // Predicated region
      $region49: #{tpu_custom_call.1} parent=5 // pred_check
        %p505 = pneg %p504
      $region50: #{tpu_custom_call.1} parent=5 // pred_check_branch
        %507 = sbr.rel (%p505) target = $region52
      $region51: #{tpu_custom_call.1} parent=5 // pred_region
        // Predicated region
        $region53: #{tpu_custom_call.1} parent=51 // pred_check
          %p508 = pneg %p65
        $region54: #{tpu_custom_call.1} parent=51 // pred_check_branch
          %510 = sbr.rel (%p508) target = $region56
        $region55: #{tpu_custom_call.1} parent=51 // pred_region
          %p511 = scmp.lt.s32.totalorder %s40, 1
          %s512 = scalar_select %p511, %s40, 1
          %s513 = smul.addr %s512, 2
          %s514 = smul.addr %s513, 8
          %s515 = scalar_lea.vmem %s0, %s514
        $region56: #{tpu_custom_call.1} parent=51 // pred_fallthru
          _
        // Predicated region
        $region57: #{tpu_custom_call.1} parent=51 // pred_check
          %p516 = pneg %p238
        $region58: #{tpu_custom_call.1} parent=51 // pred_check_branch
          %518 = sbr.rel (%p516) target = $region60
        $region59: #{tpu_custom_call.1} parent=51 // pred_region
          %s519 = sand.u32 %s33, 1
          %s520 = scalar_lea.sflag [#allocation17], %s519
          %s521 = sand.u32 %s228, 1
          %s522 = smul.addr %s521, 8
          %s523 = scalar_lea.vmem [#allocation16], %s522
          %s525 = ssub.s32 128, 128
          %526 = vsyncadd %s520, %s525
          %s527 = smul.addr %s41, 2
          %s528 = smul.addr %s527, 64
          %s529 = scalar_lea.hbm %s8, %s528
          %s530 = sshll.u32 %s523, 4
          %s531 = int_to_ptr.vmem [resolvable:$true] %s530
          %536 = dma.hbm_to_vmem [thread:$0]  %s529, 128, %s531, %s520, 64, 64, 4
        $region60: #{tpu_custom_call.1} parent=51 // pred_fallthru
          _
        // Predicated region
        $region61: #{tpu_custom_call.1} parent=51 // pred_check
          %p537 = pneg %p264
        $region62: #{tpu_custom_call.1} parent=51 // pred_check_branch
          %539 = sbr.rel (%p537) target = $region64
        $region63: #{tpu_custom_call.1} parent=51 // pred_region
          %p540 = scmp.lt.s32.totalorder %s41, 3
          %s541 = scalar_select %p540, %s41, 3
          %s542 = smul.addr %s541, 8
          %s543 = scalar_lea.vmem %s9, %s542
        $region64: #{tpu_custom_call.1} parent=51 // pred_fallthru
          _
        // Predicated region
        $region65: #{tpu_custom_call.1} parent=51 // pred_check
          %p544 = pneg %p290
        $region66: #{tpu_custom_call.1} parent=51 // pred_check_branch
          %546 = sbr.rel (%p544) target = $region68
        $region67: #{tpu_custom_call.1} parent=51 // pred_region
          %p547 = scmp.lt.s32.totalorder %s41, 3
          %s548 = scalar_select %p547, %s41, 3
          %s549 = smul.addr %s548, 4
          %s550 = scalar_lea.vmem %s10, %s549
        $region68: #{tpu_custom_call.1} parent=51 // pred_fallthru
          _
        // Predicated region
        $region69: #{tpu_custom_call.1} parent=51 // pred_check
          %p551 = pneg %p316
        $region70: #{tpu_custom_call.1} parent=51 // pred_check_branch
          %553 = sbr.rel (%p551) target = $region72
        $region71: #{tpu_custom_call.1} parent=51 // pred_region
          %p554 = scmp.lt.s32.totalorder %s41, 3
          %s555 = scalar_select %p554, %s41, 3
          %s556 = smul.addr %s555, 4
          %s557 = smul.addr %s556, 4
          %s558 = scalar_lea.vmem %s11, %s557
        $region72: #{tpu_custom_call.1} parent=51 // pred_fallthru
          _
        // Predicated region
        $region73: #{tpu_custom_call.1} parent=51 // pred_check
          %p559 = pneg %p342
        $region74: #{tpu_custom_call.1} parent=51 // pred_check_branch
          %561 = sbr.rel (%p559) target = $region76
        $region75: #{tpu_custom_call.1} parent=51 // pred_region
          %s562 = sand.u32 %s33, 1
          %s563 = scalar_lea.sflag [#allocation17], %s562
          %s564 = sand.u32 %s332, 1
          %s565 = scalar_lea.vmem [#allocation18], %s564
          %s567 = ssub.s32 16, 16
          %568 = vsyncadd %s563, %s567
          %s569 = smul.addr %s41, 16
          %s570 = scalar_lea.hbm %s12, %s569
          %s572 = sshll.u32 %s565, 4
          %s573 = int_to_ptr.vmem [resolvable:$true] %s572
          %575 = dma.hbm_to_vmem [thread:$0]  %s570, 16, %s573, %s563
        $region76: #{tpu_custom_call.1} parent=51 // pred_fallthru
          _
      $region52: #{tpu_custom_call.1} parent=5 // pred_fallthru
        _
      %p576 = scmp.le.s32.totalorder 1, %s33
      %p577 = scmp.lt.s32.totalorder %s33, 9
      %p578 = pnand %p576, %p577
      %p579 = pneg %p578
      // Predicated region
      $region77: #{tpu_custom_call.1} parent=5 // pred_check
        _
      $region78: #{tpu_custom_call.1} parent=5 // pred_check_branch
        %581 = sbr.rel (%p578) target = $region80
      $region79: #{tpu_custom_call.1} parent=5 // pred_region
        %s582 = ssub.s32 %s33, 1
        // Predicated region
        $region81: #{tpu_custom_call.1} parent=79 // pred_check
          %p583 = pneg %p92
        $region82: #{tpu_custom_call.1} parent=79 // pred_check_branch
          %585 = sbr.rel (%p583) target = $region84
        $region83: #{tpu_custom_call.1} parent=79 // pred_region
          %586 = dma.done [#allocation7], 16
        $region84: #{tpu_custom_call.1} parent=79 // pred_fallthru
          _
        // Predicated region
        $region85: #{tpu_custom_call.1} parent=79 // pred_check
          %p587 = pneg %p113
        $region86: #{tpu_custom_call.1} parent=79 // pred_check_branch
          %589 = sbr.rel (%p587) target = $region88
        $region87: #{tpu_custom_call.1} parent=79 // pred_region
          %590 = dma.done [#allocation11], 16
        $region88: #{tpu_custom_call.1} parent=79 // pred_fallthru
          _
        // Predicated region
        $region89: #{tpu_custom_call.1} parent=79 // pred_check
          %p591 = pneg %p155
        $region90: #{tpu_custom_call.1} parent=79 // pred_check_branch
          %593 = sbr.rel (%p591) target = $region92
        $region91: #{tpu_custom_call.1} parent=79 // pred_region
          %594 = dma.done [#allocation11], 16
        $region92: #{tpu_custom_call.1} parent=79 // pred_fallthru
          _
        // Predicated region
        $region93: #{tpu_custom_call.1} parent=79 // pred_check
          %p595 = pneg %p176
        $region94: #{tpu_custom_call.1} parent=79 // pred_check_branch
          %597 = sbr.rel (%p595) target = $region96
        $region95: #{tpu_custom_call.1} parent=79 // pred_region
          %598 = dma.done [#allocation9], 16
        $region96: #{tpu_custom_call.1} parent=79 // pred_fallthru
          _
        // Predicated region
        $region97: #{tpu_custom_call.1} parent=79 // pred_check
          %p599 = pneg %p197
        $region98: #{tpu_custom_call.1} parent=79 // pred_check_branch
          %601 = sbr.rel (%p599) target = $region100
        $region99: #{tpu_custom_call.1} parent=79 // pred_region
          %602 = dma.done [#allocation15], 16
        $region100: #{tpu_custom_call.1} parent=79 // pred_fallthru
          _
        %s603 = sand.u32 %s38, 1
        %s604 = scalar_lea.sflag [#allocation17], %s603
        %s605 = sand.u32 %s231, 1
        %s606 = smul.addr %s605, 8
        %s607 = scalar_lea.vmem [#allocation16], %s606
        // Predicated region
        $region101: #{tpu_custom_call.1} parent=79 // pred_check
          %p608 = pneg %p244
        $region102: #{tpu_custom_call.1} parent=79 // pred_check_branch
          %610 = sbr.rel (%p608) target = $region104
        $region103: #{tpu_custom_call.1} parent=79 // pred_region
          %611 = dma.done %s604, 128
        $region104: #{tpu_custom_call.1} parent=79 // pred_fallthru
          _
        %s612 = sand.u32 %s38, 1
        %s613 = scalar_lea.sflag [#allocation17], %s612
        %s614 = sand.u32 %s335, 1
        %s615 = scalar_lea.vmem [#allocation18], %s614
        // Predicated region
        $region105: #{tpu_custom_call.1} parent=79 // pred_check
          %p616 = pneg %p348
        $region106: #{tpu_custom_call.1} parent=79 // pred_check_branch
          %618 = sbr.rel (%p616) target = $region108
        $region107: #{tpu_custom_call.1} parent=79 // pred_region
          %619 = dma.done %s613, 16
        $region108: #{tpu_custom_call.1} parent=79 // pred_fallthru
          _
        // Predicated region
        $region109: #{tpu_custom_call.1} parent=79 // pred_check
          %p620 = pneg %p369
        $region110: #{tpu_custom_call.1} parent=79 // pred_check_branch
          %622 = sbr.rel (%p620) target = $region112
        $region111: #{tpu_custom_call.1} parent=79 // pred_region
          %623 = dma.done [#allocation20], 128
        $region112: #{tpu_custom_call.1} parent=79 // pred_fallthru
          _
        %624 = sfence
        %p625 = scmp.lt.s32.totalorder %s42, 1
        %s626 = scalar_select %p625, %s42, 1
        %s627 = smul.addr %s626, 2
        %s628 = smul.addr %s627, 8
        %s629 = scalar_lea.vmem %s0, %s628
        %p630 = pneg %p71
        %p631 = pneg %p68
        %p632 = pneg %p92
        %p633 = pneg %p89
        %p634 = pneg %p113
        %p635 = pneg %p110
        %p636 = pneg %p134
        %p637 = pneg %p131
        %p638 = pneg %p155
        %p639 = pneg %p152
        %p640 = pneg %p176
        %p641 = pneg %p173
        %p642 = pneg %p197
        %p643 = pneg %p194
        %p644 = pneg %p218
        %p645 = pneg %p215
        %s646 = sand.u32 %s38, 1
        %s647 = scalar_lea.sflag [#allocation17], %s646
        %s648 = sand.u32 %s231, 1
        %s649 = smul.addr %s648, 8
        %s650 = scalar_lea.vmem [#allocation16], %s649
        %p651 = pneg %p244
        %p652 = pneg %p241
        %p653 = scmp.lt.s32.totalorder %s43, 3
        %s654 = scalar_select %p653, %s43, 3
        %s655 = smul.addr %s654, 8
        %s656 = scalar_lea.vmem %s9, %s655
        %p657 = pneg %p270
        %p658 = pneg %p267
        %p659 = scmp.lt.s32.totalorder %s43, 3
        %s660 = scalar_select %p659, %s43, 3
        %s661 = smul.addr %s660, 4
        %s662 = scalar_lea.vmem %s10, %s661
        %p663 = pneg %p296
        %p664 = pneg %p293
        %p665 = scmp.lt.s32.totalorder %s43, 3
        %s666 = scalar_select %p665, %s43, 3
        %s667 = smul.addr %s666, 4
        %s668 = smul.addr %s667, 4
        %s669 = scalar_lea.vmem %s11, %s668
        %p670 = pneg %p322
        %p671 = pneg %p319
        %s672 = sand.u32 %s38, 1
        %s673 = scalar_lea.sflag [#allocation17], %s672
        %s674 = sand.u32 %s335, 1
        %s675 = scalar_lea.vmem [#allocation18], %s674
        %p676 = pneg %p348
        %p677 = pneg %p345
        %p678 = pneg %p369
        %p679 = pneg %p366
        %p680 = pneg %p390
        %p681 = pneg %p387
        %p682 = pneg %p416
        %p683 = pneg %p413
        %s684 = sand.u32 %s403, 1
        %s685 = scalar_lea.sflag [#allocation8], %s684
        %s686 = sand.u32 %s403, 1
        %s687 = smul.addr %s686, 16
        %s688 = scalar_lea.vmem [#allocation21], %s687
        %p689 = scmp.lt.s32.totalorder %s42, 1
        %s690 = scalar_select %p689, %s42, 1
        %s691 = smul.addr %s690, 2
        %s692 = smul.addr %s691, 8
        %s693 = scalar_lea.vmem %s0, %s692
        %p694 = scmp.lt.s32.totalorder %s43, 3
        %s695 = scalar_select %p694, %s43, 3
        %s696 = smul.addr %s695, 8
        %s697 = scalar_lea.vmem %s9, %s696
        %p698 = scmp.lt.s32.totalorder %s43, 3
        %s699 = scalar_select %p698, %s43, 3
        %s700 = smul.addr %s699, 4
        %s701 = scalar_lea.vmem %s10, %s700
        %p702 = scmp.lt.s32.totalorder %s43, 3
        %s703 = scalar_select %p702, %s43, 3
        %s704 = smul.addr %s703, 4
        %s705 = smul.addr %s704, 4
        %s706 = scalar_lea.vmem %s11, %s705
        %p708 = scmp.eq.s32.totalorder %s43, 0
        // Predicated region
        $region113: #{tpu_custom_call.1} parent=79 // pred_check
          %p709 = pneg %p708
        $region114: #{tpu_custom_call.1} parent=79 // pred_check_branch
          %711 = sbr.rel (%p709) target = $region116
        $region115: #{tpu_custom_call.1} parent=79 // pred_region
          %v712 = vld [vmem:[%s693] sm:$0xff]
          %v713 = vld [vmem:[%s693 + $0x8] sm:$0xff]
          %v714 = vld [vmem:[#allocation6] sm:$0x1]
          %v715 = vld [vmem:[#allocation10] sm:$0x1]
          %vm716 = vcmask 130048
          %v717 = vsel %vm716, %v712, 0.0
          %v718 = vsel %vm716, %v713, 0.0
          %v719 = vadd.f32 %v717, %v718
          %720 = vadd.xlane.f32.xlu0 %v719
          %v721 = vpop.xlane.xlu0 %720
          %v722 = vrot.slane %v721, 4
          %v723 = vadd.f32 %v721, %v722
          %v724 = vrot.slane %v723, 2
          %v725 = vadd.f32 %v723, %v724
          %v726 = vrot.slane %v725, 1
          %v727 = vadd.f32 %v725, %v726
          %s728 = vtos %v727
          %v729 = vrcp.pop 256.0
          %s730 = vtos %v729
          %s731 = smul.f32 %s728, %s730
          %v732 = vstv %s731
          %v733 = vsub.f32 %v712, %v732
          %v734 = vsub.f32 %v713, %v732
          %v735 = vmul.f32 %v733, %v733
          %v736 = vmul.f32 %v734, %v734
          %v737 = vsel %vm716, %v735, 0.0
          %v738 = vsel %vm716, %v736, 0.0
          %v739 = vadd.f32 %v737, %v738
          %740 = vadd.xlane.f32.xlu0 %v739
          %v741 = vpop.xlane.xlu0 %740
          %v742 = vrot.slane %v741, 4
          %v743 = vadd.f32 %v741, %v742
          %v744 = vrot.slane %v743, 2
          %v745 = vadd.f32 %v743, %v744
          %v746 = vrot.slane %v745, 1
          %v747 = vadd.f32 %v745, %v746
          %s748 = vtos %v747
          %v749 = vrcp.pop 256.0
          %s750 = vtos %v749
          %s751 = smul.f32 %s748, %s750
          %s752 = sadd.f32 %s751, 1e-08
          %v753 = vstv %s752
          %v754 = vrsqrt.pop %v753
          %s755 = vtos %v754
          %v756 = vstv %s755
          %v757 = vmul.f32 %v714, %v756
          %v759 = vlaneseq
          %v760 = vshrl.u32 %v759, 7
          %v761 = vsub.s32 0, %v760
          %v762 = vrot.slane %v757, %v761
          %v764 = vmul.f32 %v733, %v762
          %v765 = vmul.f32 %v734, %v762
          %v767 = vlaneseq
          %v768 = vshrl.u32 %v767, 7
          %v769 = vsub.s32 0, %v768
          %v770 = vrot.slane %v715, %v769
          %v772 = vadd.f32 %v764, %v770
          %v773 = vadd.f32 %v765, %v770
          %v774 = vpack.c.bf16 %v773, %v772
          %v775 = vld [vmem:[%s3] sm:$0xf]
          %v776 = vld [vmem:[%s3 + $0x4] sm:$0xf]
          %v777 = vld [vmem:[#allocation12] sm:$0x1]
          %v779 = vlaneseq
          %v780 = vshrl.u32 %v779, 7
          %v781 = vsub.s32 0, %v780
          %v782 = vrot.slane %v777, %v781
          %v786 = vunpack.c.l.b16 %v775
          %v787 = vunpack.c.l.b16 %v776
          %v788 = vpack.c.b16 %v787, %v786
          %v791 = vsel %vm716, %v774, 0
          %793 = vmatprep.subr.bf16.mxu0 0
          %794 = vmatpush1.bf16.msra.mxu0 0
          %795 = vmatprep.subr.bf16.mxu0 0
          %796 = vmatpush1.bf16.msra.mxu0 0
          %797 = vmatprep.subr.bf16.mxu0 0
          %798 = vmatpush1.bf16.msra.mxu0 0
          %799 = vmatprep.subr.bf16.mxu0 0
          %800 = vmatpush1.bf16.msra.mxu0 0
          %801 = vmatprep.subr.bf16.mxu0 0
          %802 = vmatpush1.bf16.msra.mxu0 0
          %803 = vmatprep.subr.bf16.mxu0 0
          %804 = vmatpush1.bf16.msra.mxu0 0
          %805 = vmatprep.subr.bf16.mxu0 0
          %806 = vmatpush1.bf16.msra.mxu0 0
          %807 = vmatprep.subr.bf16.mxu0 0
          %808 = vmatpush1.bf16.msra.mxu0 %v788
          %809 = vmatprep.subr.bf16.mxu0 0
          %810 = vmatpush2.bf16.msra.mxu0 0
          %811 = vmatprep.subr.bf16.mxu0 0
          %812 = vmatpush2.bf16.msra.mxu0 0
          %813 = vmatprep.subr.bf16.mxu0 0
          %814 = vmatpush2.bf16.msra.mxu0 0
          %815 = vmatprep.subr.bf16.mxu0 0
          %816 = vmatpush2.bf16.msra.mxu0 0
          %817 = vmatprep.subr.bf16.mxu0 0
          %818 = vmatpush2.bf16.msra.mxu0 0
          %819 = vmatprep.subr.bf16.mxu0 0
          %820 = vmatpush2.bf16.msra.mxu0 0
          %821 = vmatprep.subr.bf16.mxu0 0
          %822 = vmatpush2.bf16.msra.mxu0 0
          %823 = vmatprep.subr.bf16.mxu0 0
          %824 = vmatpush2.bf16.msra.mxu0 0
          %825 = vmatprep.mubr.bf16.mxu0 0
          %826 = vmatmul.mubr.bf16.gmra.mxu0 %v791
          %v827 = vpop.f32.mrf.mxu0
          %v828 = vadd.f32 %v782, %v827
          %v829 = vpop.f32.mrf.mxu0
          %v830 = vpop.f32.mrf.mxu0
          %v831 = vadd.f32 %v782, %v830
          %v832 = vpop.f32.mrf.mxu0
          %833 = vdwg.mxu0
          %834 = vst.msk [vmem:[#allocation2] sm:$0xff] %vm716, %v828
          %835 = vst.msk [vmem:[#allocation2 + $0x8] sm:$0xff] %vm716, %v831
          %836 = vst.msk [vmem:[#allocation3] sm:$0xff] %vm716, 0.0
          %837 = vst.msk [vmem:[#allocation3 + $0x8] sm:$0xff] %vm716, 0.0
          %vm838 = vcmask 261120
          %839 = vst.msk [vmem:[#allocation4] sm:$0xff] %vm838, 0.0
          %840 = vst.msk [vmem:[#allocation4 + $0x8] sm:$0xff] %vm838, 0.0
          %vm841 = vcmask 257024
          %842 = vst.msk [vmem:[#allocation4 + $0x10] sm:$0xf] %vm841, 0.0
        $region116: #{tpu_custom_call.1} parent=79 // pred_fallthru
          _
        %v843 = vld [vmem:[%s697] sm:$0x3f]
        %v844 = vld [vmem:[#allocation2] sm:$0xff]
        %v845 = vld [vmem:[#allocation2 + $0x8] sm:$0xff]
        %v846 = vpack.c.bf16 %v845, %v844
        %v847 = vld [vmem:[%s607] sm:$0xf]
        %v848 = vld [vmem:[%s607 + $0x4] sm:$0xf]
        %v849 = vlaneseq
        %v850 = vshrl.u32 %v849, 7
        %v851 = vsub.s32 0, %v850
        %v852 = vrot.slane %v843, %v851
        %v855 = vunpack.c.l.b16 %v847
        %v856 = vunpack.c.l.b16 %v848
        %v857 = vpack.c.b16 %v856, %v855
        %vm859 = vcmask 130048
        %v861 = vsel %vm859, %v846, 0
        %863 = vmatprep.subr.bf16.mxu0 0
        %864 = vmatpush1.bf16.msra.mxu0 0
        %865 = vmatprep.subr.bf16.mxu0 0
        %866 = vmatpush1.bf16.msra.mxu0 0
        %867 = vmatprep.subr.bf16.mxu0 0
        %868 = vmatpush1.bf16.msra.mxu0 0
        %869 = vmatprep.subr.bf16.mxu0 0
        %870 = vmatpush1.bf16.msra.mxu0 0
        %871 = vmatprep.subr.bf16.mxu0 0
        %872 = vmatpush1.bf16.msra.mxu0 0
        %873 = vmatprep.subr.bf16.mxu0 0
        %874 = vmatpush1.bf16.msra.mxu0 0
        %875 = vmatprep.subr.bf16.mxu0 0
        %876 = vmatpush1.bf16.msra.mxu0 0
        %877 = vmatprep.subr.bf16.mxu0 0
        %878 = vmatpush1.bf16.msra.mxu0 %v857
        %879 = vmatprep.subr.bf16.mxu0 0
        %880 = vmatpush2.bf16.msra.mxu0 0
        %881 = vmatprep.subr.bf16.mxu0 0
        %882 = vmatpush2.bf16.msra.mxu0 0
        %883 = vmatprep.subr.bf16.mxu0 0
        %884 = vmatpush2.bf16.msra.mxu0 0
        %885 = vmatprep.subr.bf16.mxu0 0
        %886 = vmatpush2.bf16.msra.mxu0 0
        %887 = vmatprep.subr.bf16.mxu0 0
        %888 = vmatpush2.bf16.msra.mxu0 0
        %889 = vmatprep.subr.bf16.mxu0 0
        %890 = vmatpush2.bf16.msra.mxu0 0
        %891 = vmatprep.subr.bf16.mxu0 0
        %892 = vmatpush2.bf16.msra.mxu0 0
        %893 = vmatprep.subr.bf16.mxu0 0
        %894 = vmatpush2.bf16.msra.mxu0 0
        %895 = vmatprep.mubr.bf16.mxu0 0
        %896 = vmatmul.mubr.bf16.gmra.mxu0 %v861
        %v897 = vpop.f32.mrf.mxu0
        %v898 = vadd.f32 %v852, %v897
        %v899 = vpop.f32.mrf.mxu0
        %v900 = vpop.f32.mrf.mxu0
        %v901 = vadd.f32 %v852, %v900
        %v902 = vpop.f32.mrf.mxu0
        %903 = vdwg.mxu0
        %s904 = sld [smem:[#allocation13 + %s43]]
        %vm905 = vcmp.ge.f32.partialorder %v898, 0.0
        %vm906 = vcmp.ge.f32.partialorder %v901, 0.0
        %v907 = vstv %s904
        %v908 = vmul.f32 %v907, %v898
        %v909 = vmul.f32 %v907, %v901
        %v910 = vsel %vm905, %v898, %v908
        %v911 = vsel %vm906, %v901, %v909
        %vm912 = vcmask 261120
        %v913 = vsel %vm912, %v910, 0.0
        %v914 = vsel %vm912, %v911, 0.0
        %v915 = vadd.f32 %v913, %v914
        %916 = vadd.xlane.f32.xlu0 %v915
        %v917 = vpop.xlane.xlu0 %916
        %v918 = vrot.slane %v917, 4
        %v919 = vadd.f32 %v917, %v918
        %v920 = vrot.slane %v919, 2
        %v921 = vadd.f32 %v919, %v920
        %v922 = vrot.slane %v921, 1
        %v923 = vadd.f32 %v921, %v922
        %s924 = vtos %v923
        %v925 = vrcp.pop 512.0
        %s926 = vtos %v925
        %s927 = smul.f32 %s924, %s926
        %v928 = vstv %s927
        %v929 = vsub.f32 %v910, %v928
        %v930 = vsub.f32 %v911, %v928
        %v931 = vmul.f32 %v929, %v929
        %v932 = vmul.f32 %v930, %v930
        %v933 = vsel %vm912, %v931, 0.0
        %v934 = vsel %vm912, %v932, 0.0
        %v935 = vadd.f32 %v933, %v934
        %936 = vadd.xlane.f32.xlu0 %v935
        %v937 = vpop.xlane.xlu0 %936
        %v938 = vrot.slane %v937, 4
        %v939 = vadd.f32 %v937, %v938
        %v940 = vrot.slane %v939, 2
        %v941 = vadd.f32 %v939, %v940
        %v942 = vrot.slane %v941, 1
        %v943 = vadd.f32 %v941, %v942
        %s944 = vtos %v943
        %v945 = vrcp.pop 512.0
        %s946 = vtos %v945
        %s947 = smul.f32 %s944, %s946
        %s948 = sadd.f32 %s947, 1e-08
        %v949 = vstv %s948
        %v950 = vrsqrt.pop %v949
        %s951 = vtos %v950
        %v952 = vstv %s951
        %v953 = vmul.f32 %v843, %v952
        %v954 = vlaneseq
        %v955 = vshrl.u32 %v954, 7
        %v956 = vsub.s32 1, %v955
        %v957 = vrot.slane %v953, %v956
        %v958 = vmul.f32 %v929, %v957
        %v959 = vmul.f32 %v930, %v957
        %v960 = vlaneseq
        %v961 = vshrl.u32 %v960, 7
        %v962 = vsub.s32 2, %v961
        %v963 = vrot.slane %v843, %v962
        %v964 = vadd.f32 %v958, %v963
        %v965 = vadd.f32 %v959, %v963
        %966 = vst.msk [vmem:[#allocation4 + $0x2] sm:$0xff] %vm912, %v964
        %967 = vst.msk [vmem:[#allocation4 + $0xa] sm:$0xff] %vm912, %v965
        %v968 = vld [vmem:[%s701] sm:$0x7]
        %p969 = scmp.lt.s32.totalorder %s43, 0
        %s970 = ssub.s32 0, %s43
        %s971 = scalar_select %p969, %s970, %s43
        %s972 = sand.u32 %s971, 1
        %s973 = ssub.s32 0, %s972
        %s974 = scalar_select %p969, %s973, %s972
        %p975 = scmp.ne.s32.totalorder %s974, 0
        %p976 = scmp.lt.s32.totalorder %s974, 0
        %p977 = pnand %p976, %p975
        %p978 = pneg %p977
        %s979 = sadd.s32 %s974, 2
        %s980 = scalar_select %p978, %s979, %s974
        %p981 = scmp.eq.s32.totalorder %s980, 0
        // Predicated region
        $region117: #{tpu_custom_call.1} parent=79 // pred_check
          %p982 = pneg %p981
        $region118: #{tpu_custom_call.1} parent=79 // pred_check_branch
          %984 = sbr.rel (%p982) target = $region120
        $region119: #{tpu_custom_call.1} parent=79 // pred_region
          %v985 = vld [vmem:[#allocation4 + $0x1] sm:$0xff]
          %v986 = vld [vmem:[#allocation4 + $0x9] sm:$0xff]
          %v987 = vlaneseq
          %v988 = vshrl.u32 %v987, 7
          %v989 = vsub.s32 0, %v988
          %v990 = vrot.slane %v968, %v989
          %v991 = vmul.f32 %v985, %v990
          %v992 = vmul.f32 %v986, %v990
          %v993 = vadd.f32 %v991, 0.0
          %v994 = vadd.f32 %v992, 0.0
          %v995 = vld [vmem:[#allocation4 + $0x2] sm:$0xff]
          %v996 = vld [vmem:[#allocation4 + $0xa] sm:$0xff]
          %v997 = vlaneseq
          %v998 = vshrl.u32 %v997, 7
          %v999 = vsub.s32 1, %v998
          %v1000 = vrot.slane %v968, %v999
          %v1001 = vmul.f32 %v995, %v1000
          %v1002 = vmul.f32 %v996, %v1000
          %v1003 = vadd.f32 %v993, %v1001
          %v1004 = vadd.f32 %v994, %v1002
          %v1005 = vld [vmem:[#allocation4 + $0x3] sm:$0xff]
          %v1006 = vld [vmem:[#allocation4 + $0xb] sm:$0xff]
          %v1007 = vlaneseq
          %v1008 = vshrl.u32 %v1007, 7
          %v1009 = vsub.s32 2, %v1008
          %v1010 = vrot.slane %v968, %v1009
          %v1011 = vmul.f32 %v1005, %v1010
          %v1012 = vmul.f32 %v1006, %v1010
          %v1013 = vadd.f32 %v1003, %v1011
          %v1014 = vadd.f32 %v1004, %v1012
          %1015 = vst.msk [vmem:[#allocation4 + $0x2] sm:$0xff] %vm912, %v1013
          %1016 = vst.msk [vmem:[#allocation4 + $0xa] sm:$0xff] %vm912, %v1014
        $region120: #{tpu_custom_call.1} parent=79 // pred_fallthru
          _
        %p1017 = scmp.eq.s32.totalorder %s980, 1
        // Predicated region
        $region121: #{tpu_custom_call.1} parent=79 // pred_check
          %p1018 = pneg %p1017
        $region122: #{tpu_custom_call.1} parent=79 // pred_check_branch
          %1020 = sbr.rel (%p1018) target = $region124
        $region123: #{tpu_custom_call.1} parent=79 // pred_region
          %v1021 = vld [vmem:[#allocation4] sm:$0xff]
          %v1022 = vld [vmem:[#allocation4 + $0x8] sm:$0xff]
          %v1023 = vlaneseq
          %v1024 = vshrl.u32 %v1023, 7
          %v1025 = vsub.s32 0, %v1024
          %v1026 = vrot.slane %v968, %v1025
          %v1027 = vmul.f32 %v1021, %v1026
          %v1028 = vmul.f32 %v1022, %v1026
          %v1029 = vadd.f32 %v1027, 0.0
          %v1030 = vadd.f32 %v1028, 0.0
          %v1031 = vld [vmem:[#allocation4 + $0x2] sm:$0xff]
          %v1032 = vld [vmem:[#allocation4 + $0xa] sm:$0xff]
          %v1033 = vlaneseq
          %v1034 = vshrl.u32 %v1033, 7
          %v1035 = vsub.s32 1, %v1034
          %v1036 = vrot.slane %v968, %v1035
          %v1037 = vmul.f32 %v1031, %v1036
          %v1038 = vmul.f32 %v1032, %v1036
          %v1039 = vadd.f32 %v1029, %v1037
          %v1040 = vadd.f32 %v1030, %v1038
          %v1041 = vld [vmem:[#allocation4 + $0x4] sm:$0xff]
          %v1042 = vld [vmem:[#allocation4 + $0xc] sm:$0xff]
          %v1043 = vlaneseq
          %v1044 = vshrl.u32 %v1043, 7
          %v1045 = vsub.s32 2, %v1044
          %v1046 = vrot.slane %v968, %v1045
          %v1047 = vmul.f32 %v1041, %v1046
          %v1048 = vmul.f32 %v1042, %v1046
          %v1049 = vadd.f32 %v1039, %v1047
          %v1050 = vadd.f32 %v1040, %v1048
          %1051 = vst.msk [vmem:[#allocation4 + $0x2] sm:$0xff] %vm912, %v1049
          %1052 = vst.msk [vmem:[#allocation4 + $0xa] sm:$0xff] %vm912, %v1050
        $region124: #{tpu_custom_call.1} parent=79 // pred_fallthru
          _
        %v1053 = vld [vmem:[#allocation4 + $0x2] sm:$0xff]
        %v1054 = vld [vmem:[#allocation4 + $0xa] sm:$0xff]
        %v1055 = vlaneseq
        %v1056 = vshrl.u32 %v1055, 7
        %v1057 = vsub.s32 3, %v1056
        %v1058 = vrot.slane %v843, %v1057
        %v1059 = vadd.f32 %v1053, %v1058
        %v1060 = vadd.f32 %v1054, %v1058
        %s1061 = sld [smem:[#allocation14 + %s43]]
        %vm1062 = vcmp.ge.f32.partialorder %v1059, 0.0
        %vm1063 = vcmp.ge.f32.partialorder %v1060, 0.0
        %v1064 = vstv %s1061
        %v1065 = vmul.f32 %v1064, %v1059
        %v1066 = vmul.f32 %v1064, %v1060
        %v1067 = vsel %vm1062, %v1059, %v1065
        %v1068 = vsel %vm1063, %v1060, %v1066
        %v1069 = vsel %vm912, %v1067, 0.0
        %v1070 = vsel %vm912, %v1068, 0.0
        %v1071 = vadd.f32 %v1069, %v1070
        %1072 = vadd.xlane.f32.xlu0 %v1071
        %v1073 = vpop.xlane.xlu0 %1072
        %v1074 = vrot.slane %v1073, 4
        %v1075 = vadd.f32 %v1073, %v1074
        %v1076 = vrot.slane %v1075, 2
        %v1077 = vadd.f32 %v1075, %v1076
        %v1078 = vrot.slane %v1077, 1
        %v1079 = vadd.f32 %v1077, %v1078
        %s1080 = vtos %v1079
        %v1081 = vrcp.pop 512.0
        %s1082 = vtos %v1081
        %s1083 = smul.f32 %s1080, %s1082
        %v1084 = vstv %s1083
        %v1085 = vsub.f32 %v1067, %v1084
        %v1086 = vsub.f32 %v1068, %v1084
        %v1087 = vmul.f32 %v1085, %v1085
        %v1088 = vmul.f32 %v1086, %v1086
        %v1089 = vsel %vm912, %v1087, 0.0
        %v1090 = vsel %vm912, %v1088, 0.0
        %v1091 = vadd.f32 %v1089, %v1090
        %1092 = vadd.xlane.f32.xlu0 %v1091
        %v1093 = vpop.xlane.xlu0 %1092
        %v1094 = vrot.slane %v1093, 4
        %v1095 = vadd.f32 %v1093, %v1094
        %v1096 = vrot.slane %v1095, 2
        %v1097 = vadd.f32 %v1095, %v1096
        %v1098 = vrot.slane %v1097, 1
        %v1099 = vadd.f32 %v1097, %v1098
        %s1100 = vtos %v1099
        %v1101 = vrcp.pop 512.0
        %s1102 = vtos %v1101
        %s1103 = smul.f32 %s1100, %s1102
        %s1104 = sadd.f32 %s1103, 1e-08
        %v1105 = vstv %s1104
        %v1106 = vrsqrt.pop %v1105
        %s1107 = vtos %v1106
        %v1108 = vstv %s1107
        %v1109 = vmul.f32 %v843, %v1108
        %v1110 = vlaneseq
        %v1111 = vshrl.u32 %v1110, 7
        %v1112 = vsub.s32 4, %v1111
        %v1113 = vrot.slane %v1109, %v1112
        %v1114 = vmul.f32 %v1085, %v1113
        %v1115 = vmul.f32 %v1086, %v1113
        %v1116 = vlaneseq
        %v1117 = vshrl.u32 %v1116, 7
        %v1118 = vsub.s32 5, %v1117
        %v1119 = vrot.slane %v843, %v1118
        %v1120 = vadd.f32 %v1114, %v1119
        %v1121 = vadd.f32 %v1115, %v1119
        %v1122 = vpack.c.bf16 %v1121, %v1120
        %v1123 = vld [vmem:[%s706] sm:$0xf]
        %v1124 = vld [vmem:[%s706 + $0x4] sm:$0xf]
        %v1125 = vld [vmem:[%s706 + $0x8] sm:$0xf]
        %v1126 = vld [vmem:[%s706 + $0xc] sm:$0xf]
        %v1127 = vld [vmem:[%s615] sm:$0x1]
        %v1129 = vlaneseq
        %v1130 = vshrl.u32 %v1129, 7
        %v1131 = vsub.s32 0, %v1130
        %v1132 = vrot.slane %v1127, %v1131
        %v1138 = vunpack.c.l.b16 %v1123
        %v1139 = vunpack.c.l.b16 %v1124
        %v1140 = vunpack.c.l.b16 %v1125
        %v1141 = vunpack.c.l.b16 %v1126
        %v1142 = vpack.c.b16 %v1139, %v1138
        %v1143 = vpack.c.b16 %v1141, %v1140
        %v1147 = vsel %vm912, %v1122, 0
        %1149 = vmatprep.subr.bf16.mxu0 0
        %1150 = vmatpush1.bf16.msra.mxu0 0
        %1151 = vmatprep.subr.bf16.mxu0 0
        %1152 = vmatpush1.bf16.msra.mxu0 0
        %1153 = vmatprep.subr.bf16.mxu0 0
        %1154 = vmatpush1.bf16.msra.mxu0 0
        %1155 = vmatprep.subr.bf16.mxu0 0
        %1156 = vmatpush1.bf16.msra.mxu0 0
        %1157 = vmatprep.subr.bf16.mxu0 0
        %1158 = vmatpush1.bf16.msra.mxu0 0
        %1159 = vmatprep.subr.bf16.mxu0 0
        %1160 = vmatpush1.bf16.msra.mxu0 0
        %1161 = vmatprep.subr.bf16.mxu0 0
        %1162 = vmatpush1.bf16.msra.mxu0 %v1143
        %1163 = vmatprep.subr.bf16.mxu0 0
        %1164 = vmatpush1.bf16.msra.mxu0 %v1142
        %1165 = vmatprep.subr.bf16.mxu0 0
        %1166 = vmatpush2.bf16.msra.mxu0 0
        %1167 = vmatprep.subr.bf16.mxu0 0
        %1168 = vmatpush2.bf16.msra.mxu0 0
        %1169 = vmatprep.subr.bf16.mxu0 0
        %1170 = vmatpush2.bf16.msra.mxu0 0
        %1171 = vmatprep.subr.bf16.mxu0 0
        %1172 = vmatpush2.bf16.msra.mxu0 0
        %1173 = vmatprep.subr.bf16.mxu0 0
        %1174 = vmatpush2.bf16.msra.mxu0 0
        %1175 = vmatprep.subr.bf16.mxu0 0
        %1176 = vmatpush2.bf16.msra.mxu0 0
        %1177 = vmatprep.subr.bf16.mxu0 0
        %1178 = vmatpush2.bf16.msra.mxu0 0
        %1179 = vmatprep.subr.bf16.mxu0 0
        %1180 = vmatpush2.bf16.msra.mxu0 0
        %1181 = vmatprep.mubr.bf16.mxu0 0
        %1182 = vmatmul.mubr.bf16.gmra.mxu0 %v1147
        %v1183 = vpop.f32.mrf.mxu0
        %v1184 = vadd.f32 %v1132, %v1183
        %v1185 = vpop.f32.mrf.mxu0
        %v1186 = vpop.f32.mrf.mxu0
        %v1187 = vadd.f32 %v1132, %v1186
        %v1188 = vpop.f32.mrf.mxu0
        %1189 = vdwg.mxu0
        %v1190 = vadd.f32 %v844, %v1184
        %v1191 = vadd.f32 %v845, %v1187
        %1192 = vst.msk [vmem:[#allocation2] sm:$0xff] %vm859, %v1190
        %1193 = vst.msk [vmem:[#allocation2 + $0x8] sm:$0xff] %vm859, %v1191
        %v1194 = vld [vmem:[#allocation3] sm:$0xff]
        %v1195 = vld [vmem:[#allocation3 + $0x8] sm:$0xff]
        %1198 = vrot.lane.b32.xlu0 %v1184, 112
        %v1199 = vpop.permute.xlu0 %1198
        %1200 = vrot.lane.b32.xlu0 %v1187, 112
        %v1201 = vpop.permute.xlu0 %1200
        %v1204 = vadd.f32 %v1194, %v1199
        %v1205 = vadd.f32 %v1195, %v1201
        %1206 = vst.msk [vmem:[#allocation3] sm:$0xff] %vm859, %v1204
        %1207 = vst.msk [vmem:[#allocation3 + $0x8] sm:$0xff] %vm859, %v1205
        %p1208 = scmp.eq.s32.totalorder %s43, 3
        // Predicated region
        $region125: #{tpu_custom_call.1} parent=79 // pred_check
          %p1209 = pneg %p1208
        $region126: #{tpu_custom_call.1} parent=79 // pred_check_branch
          %1211 = sbr.rel (%p1209) target = $region128
        $region127: #{tpu_custom_call.1} parent=79 // pred_region
          %v1212 = vld [vmem:[#allocation3] sm:$0xff]
          %v1213 = vld [vmem:[#allocation3 + $0x8] sm:$0xff]
          %s1214 = sld [smem:[#allocation5]]
          %vm1215 = vcmp.ge.f32.partialorder %v1212, 0.0
          %vm1216 = vcmp.ge.f32.partialorder %v1213, 0.0
          %v1217 = vstv %s1214
          %v1218 = vmul.f32 %v1217, %v1212
          %v1219 = vmul.f32 %v1217, %v1213
          %v1220 = vsel %vm1215, %v1212, %v1218
          %v1221 = vsel %vm1216, %v1213, %v1219
          %v1222 = vpack.c.bf16 %v1221, %v1220
          %v1223 = vld [vmem:[#allocation19] sm:$0xf]
          %v1224 = vld [vmem:[#allocation19 + $0x4] sm:$0xf]
          %v1225 = vld [vmem:[%s14] sm:$0x1]
          %v1227 = vlaneseq
          %v1228 = vshrl.u32 %v1227, 7
          %v1229 = vsub.s32 0, %v1228
          %v1230 = vrot.slane %v1225, %v1229
          %v1234 = vunpack.c.l.b16 %v1223
          %v1235 = vunpack.c.l.b16 %v1224
          %v1236 = vpack.c.b16 %v1235, %v1234
          %v1239 = vsel %vm859, %v1222, 0
          %1241 = vmatprep.subr.bf16.mxu0 0
          %1242 = vmatpush1.bf16.msra.mxu0 0
          %1243 = vmatprep.subr.bf16.mxu0 0
          %1244 = vmatpush1.bf16.msra.mxu0 0
          %1245 = vmatprep.subr.bf16.mxu0 0
          %1246 = vmatpush1.bf16.msra.mxu0 0
          %1247 = vmatprep.subr.bf16.mxu0 0
          %1248 = vmatpush1.bf16.msra.mxu0 0
          %1249 = vmatprep.subr.bf16.mxu0 0
          %1250 = vmatpush1.bf16.msra.mxu0 0
          %1251 = vmatprep.subr.bf16.mxu0 0
          %1252 = vmatpush1.bf16.msra.mxu0 0
          %1253 = vmatprep.subr.bf16.mxu0 0
          %1254 = vmatpush1.bf16.msra.mxu0 0
          %1255 = vmatprep.subr.bf16.mxu0 0
          %1256 = vmatpush1.bf16.msra.mxu0 %v1236
          %1257 = vmatprep.subr.bf16.mxu0 0
          %1258 = vmatpush2.bf16.msra.mxu0 0
          %1259 = vmatprep.subr.bf16.mxu0 0
          %1260 = vmatpush2.bf16.msra.mxu0 0
          %1261 = vmatprep.subr.bf16.mxu0 0
          %1262 = vmatpush2.bf16.msra.mxu0 0
          %1263 = vmatprep.subr.bf16.mxu0 0
          %1264 = vmatpush2.bf16.msra.mxu0 0
          %1265 = vmatprep.subr.bf16.mxu0 0
          %1266 = vmatpush2.bf16.msra.mxu0 0
          %1267 = vmatprep.subr.bf16.mxu0 0
          %1268 = vmatpush2.bf16.msra.mxu0 0
          %1269 = vmatprep.subr.bf16.mxu0 0
          %1270 = vmatpush2.bf16.msra.mxu0 0
          %1271 = vmatprep.subr.bf16.mxu0 0
          %1272 = vmatpush2.bf16.msra.mxu0 0
          %1273 = vmatprep.mubr.bf16.mxu0 0
          %1274 = vmatmul.mubr.bf16.gmra.mxu0 %v1239
          %v1275 = vpop.f32.mrf.mxu0
          %v1276 = vadd.f32 %v1230, %v1275
          %v1277 = vpop.f32.mrf.mxu0
          %v1278 = vpop.f32.mrf.mxu0
          %v1279 = vadd.f32 %v1230, %v1278
          %v1280 = vpop.f32.mrf.mxu0
          %1281 = vdwg.mxu0
          %1282 = vst [vmem:[%s688] sm:$0xff] %v1276
          %1283 = vst [vmem:[%s688 + $0x8] sm:$0xff] %v1279
        $region128: #{tpu_custom_call.1} parent=79 // pred_fallthru
          _
        %s1284 = sand.u32 %s403, 1
        %s1285 = scalar_lea.sflag [#allocation8], %s1284
        %s1286 = sand.u32 %s403, 1
        %s1287 = smul.addr %s1286, 16
        %s1288 = scalar_lea.vmem [#allocation21], %s1287
        // Predicated region
        $region129: #{tpu_custom_call.1} parent=79 // pred_check
          %p1289 = pneg %p413
        $region130: #{tpu_custom_call.1} parent=79 // pred_check_branch
          %1291 = sbr.rel (%p1289) target = $region132
        $region131: #{tpu_custom_call.1} parent=79 // pred_region
          %s1293 = ssub.s32 256, 256
          %1294 = vsyncadd %s1285, %s1293
          %s1295 = smul.addr %s42, 2
          %s1296 = smul.addr %s1295, 128
          %s1297 = scalar_lea.hbm %s15, %s1296
          %s1298 = sshll.u32 %s1288, 4
          %s1299 = int_to_ptr.vmem [resolvable:$true] %s1298
          %1304 = dma.vmem_to_hbm [thread:$0]  %s1299, 256, %s1297, %s1285, 128, 128, 8
        $region132: #{tpu_custom_call.1} parent=79 // pred_fallthru
          _
      $region80: #{tpu_custom_call.1} parent=5 // pred_fallthru
        _
      %p1305 = scmp.le.s32.totalorder 2, %s33
      // Predicated region
      $region133: #{tpu_custom_call.1} parent=5 // pred_check
        %p1306 = pneg %p1305
      $region134: #{tpu_custom_call.1} parent=5 // pred_check_branch
        %1308 = sbr.rel (%p1306) target = $region136
      $region135: #{tpu_custom_call.1} parent=5 // pred_region
        %s1309 = ssub.s32 %s33, 2
        // Predicated region
        $region137: #{tpu_custom_call.1} parent=135 // pred_check
          %p1310 = pneg %p419
        $region138: #{tpu_custom_call.1} parent=135 // pred_check_branch
          %1312 = sbr.rel (%p1310) target = $region140
        $region139: #{tpu_custom_call.1} parent=135 // pred_region
          %s1313 = sand.u32 %s404, 1
          %s1314 = scalar_lea.sflag [#allocation8], %s1313
          %s1315 = sand.u32 %s404, 1
          %s1316 = smul.addr %s1315, 16
          %s1317 = scalar_lea.vmem [#allocation21], %s1316
          %1318 = dma.done %s1314, 256
        $region140: #{tpu_custom_call.1} parent=135 // pred_fallthru
          _
      $region136: #{tpu_custom_call.1} parent=5 // pred_fallthru
        _
    $region6: #{tpu_custom_call.1} parent=1 // loop_footer
      %s37 = sadd.s32 1, %s33
    $region7: #{tpu_custom_call.1} parent=1 // loop_footer_branch
      %32 = sbr.rel target = $region3
    $region8: #{tpu_custom_call.1} parent=1 // loop_exit
      _
    %1319 = vsyncpa [#allocation7], 1
    %s1320 = scalar_lea.sflag [#allocation7], 1
    %1321 = vsyncpa %s1320, 1
    %1322 = vsyncpa [#allocation11], 1
    %1323 = vsyncpa [#allocation17], 1
    %s1324 = scalar_lea.sflag [#allocation17], 1
    %1325 = vsyncpa %s1324, 1
    %1326 = vsyncpa [#allocation20], 1
    %1327 = vsyncpa [#allocation8], 1
    %s1328 = scalar_lea.sflag [#allocation8], 1
    %1329 = vsyncpa %s1328, 1
    %1330 = vsyncpa [#allocation9], 1
    %s1331 = scalar_lea.sflag [#allocation9], 1
    %1332 = vsyncpa %s1331, 1
    %1333 = vsyncpa [#allocation15], 1

</llo_original>
